<compile_context>
chip_gen: v5e
topology: v5e:2x2
jax: 0.10.0
libtpu: 0.0.40
codegen_flags: <defaults>
</compile_context>

<pallas_src>
import functools
import numpy as np
import jax
import jax.numpy as jnp
from jax.experimental import pallas as pl
from jax.experimental.pallas import tpu as pltpu

LN_EPS = 1e-5                      # nn.LayerNorm default eps
NEG_BIAS = -1e9                    # finite stand-in for masked_fill_(-inf)
VMEM_LIMIT_BYTES = 48 * 1024 * 1024  # above the 16/32 MiB default scoped limits,
                                     # below v7x's 64 MiB physical VMEM per TC


def _compiler_params():
    return pltpu.CompilerParams(
        dimension_semantics=("parallel",),
        vmem_limit_bytes=VMEM_LIMIT_BYTES,
    )


def _choose_tile_m(M):
    """Largest 'nice' row tile dividing M (multiple of 8); falls back to full M."""
    for tm in (1024, 512, 256):
        if M % tm == 0:
            return tm
    return M


# ---------------------------------------------------------------------------
# Kernel 1: fused Q|K|V projection (M-tiled grid, weights VMEM-resident)
# ---------------------------------------------------------------------------
def _qkv_kernel(x_ref, w_ref, b_ref, q_ref, k_ref, v_ref):
    D = q_ref.shape[1]
    x = x_ref[...].astype(jnp.bfloat16)
    qkv = jnp.dot(x, w_ref[...], preferred_element_type=jnp.float32) + b_ref[...]
    # Static lane-axis slices of the fused result; at production sizes D is a
    # multiple of 128 so these are lane-aligned.
    q_ref[...] = qkv[:, :D].astype(jnp.bfloat16)
    k_ref[...] = qkv[:, D:2 * D].astype(jnp.bfloat16)
    v_ref[...] = qkv[:, 2 * D:].astype(jnp.bfloat16)


def qkv_projection(x, wqkv, bqkv, tm):
    """x: [M, D] f32, wqkv: [D, 3D] bf16, bqkv: [1, 3D] f32 -> 3 x [M, D] bf16."""
    M, D = x.shape
    D3 = wqkv.shape[1]
    row_spec = pl.BlockSpec((tm, D), lambda i: (i, 0))
    return pl.pallas_call(
        _qkv_kernel,
        grid=(M // tm,),
        in_specs=[row_spec,
                  pl.BlockSpec((D, D3), lambda i: (0, 0)),
                  pl.BlockSpec((1, D3), lambda i: (0, 0))],
        out_specs=[row_spec, row_spec, row_spec],
        out_shape=[jax.ShapeDtypeStruct((M, D), jnp.bfloat16)] * 3,
        compiler_params=_compiler_params(),
    )(x, wqkv, bqkv)


# ---------------------------------------------------------------------------
# Kernel 2: scaled-dot-product attention, grid over B*H pseudo-heads
# ---------------------------------------------------------------------------
def _attention_kernel(q_ref, k_ref, v_ref, bias_ref, ctx_ref, attn_ref):
    q = q_ref[...]                                   # [S, dh] bf16
    k = k_ref[...]                                   # [S, dh] bf16
    v = v_ref[...]                                   # [S, dh] bf16
    # scores = q @ k^T without materializing the transpose (contract over dh).
    scores = jax.lax.dot_general(q, k, (((1,), (1,)), ((), ())),
                                 preferred_element_type=jnp.float32)   # [S, S] f32
    scores = scores + bias_ref[...]                  # [1, S] key-padding bias

    # softmax(dim=-1) in f32; divide replaced by EUP reciprocal + VPU multiply.
    m = jnp.max(scores, axis=-1, keepdims=True)
    e = jnp.exp(scores - m)
    inv = pl.reciprocal(jnp.sum(e, axis=-1, keepdims=True), approx=True)
    attn = e * inv
    attn_ref[...] = attn                             # returned to the user (f32)
    ctx_ref[...] = jnp.dot(attn.astype(jnp.bfloat16), v,
                           preferred_element_type=jnp.float32).astype(jnp.bfloat16)


def attention_all_heads(q, k, v, key_bias_rep):
    """q,k,v: [BH, S, dh] bf16; key_bias_rep: [BH, 1, S] f32 additive bias."""
    BH, S, dh = q.shape
    head_spec = pl.BlockSpec((None, S, dh), lambda i: (i, 0, 0))
    ctx, attn = pl.pallas_call(
        _attention_kernel,
        grid=(BH,),
        in_specs=[head_spec, head_spec, head_spec,
                  pl.BlockSpec((None, 1, S), lambda i: (i, 0, 0))],
        out_specs=[pl.BlockSpec((None, S, dh), lambda i: (i, 0, 0)),
                   pl.BlockSpec((None, S, S), lambda i: (i, 0, 0))],
        out_shape=[jax.ShapeDtypeStruct((BH, S, dh), jnp.bfloat16),
                   jax.ShapeDtypeStruct((BH, S, S), jnp.float32)],
        compiler_params=_compiler_params(),
    )(q, k, v, key_bias_rep)
    return ctx, attn


# ---------------------------------------------------------------------------
# Kernel 3: output projection + residual + LN + FFN + LN (M-tiled grid)
# ---------------------------------------------------------------------------
def _layer_norm(y, gamma, beta):
    # One-pass variance: E[x^2] - mean^2 (saves one XLU reduction per LN per tile).
    mean = jnp.mean(y, axis=-1, keepdims=True)
    var = jnp.mean(y * y, axis=-1, keepdims=True) - mean * mean
    return (y - mean) * jax.lax.rsqrt(var + LN_EPS) * gamma + beta


def _out_ffn_kernel(ctx_ref, res_ref, wo_ref, bo_ref, g1_ref, beta1_ref,
                    w1_ref, b1_ref, w2_ref, b2_ref, g2_ref, beta2_ref, o_ref):
    # x1  = LN(residual + ctx @ Wo + bo)
    # out = LN(x1 + relu(x1 @ W1 + b1) @ W2 + b2)
    y = jnp.dot(ctx_ref[...], wo_ref[...],
                preferred_element_type=jnp.float32) + bo_ref[...]
    y = y + res_ref[...]
    x1 = _layer_norm(y, g1_ref[...], beta1_ref[...])

    h = jnp.maximum(jnp.dot(x1.astype(jnp.bfloat16), w1_ref[...],
                            preferred_element_type=jnp.float32) + b1_ref[...], 0.0)
    y2 = jnp.dot(h.astype(jnp.bfloat16), w2_ref[...],
                 preferred_element_type=jnp.float32) + b2_ref[...]
    y2 = y2 + x1
    o_ref[...] = _layer_norm(y2, g2_ref[...], beta2_ref[...])


def out_proj_ffn(ctx, res, wo, bo, ln1_g, ln1_b, w1, b1, w2, b2, ln2_g, ln2_b, tm):
    M, D = res.shape
    F = w1.shape[1]
    row_spec = pl.BlockSpec((tm, D), lambda i: (i, 0))

    def const(shape):
        return pl.BlockSpec(shape, lambda i: (0, 0))

    return pl.pallas_call(
        _out_ffn_kernel,
        grid=(M // tm,),
        in_specs=[row_spec, row_spec,
                  const((D, D)), const((1, D)), const((1, D)), const((1, D)),
                  const((D, F)), const((1, F)), const((F, D)), const((1, D)),
                  const((1, D)), const((1, D))],
        out_specs=row_spec,
        out_shape=jax.ShapeDtypeStruct((M, D), jnp.float32),
        compiler_params=_compiler_params(),
    )(ctx, res, wo, bo, ln1_g, ln1_b, w1, b1, w2, b2, ln2_g, ln2_b)


# ---------------------------------------------------------------------------
# Parameter init (deterministic, mirrors the PyTorch module's shapes)
# ---------------------------------------------------------------------------
def init_params(key, vocab_size, max_seq_len, num_layers, model_dim, ffn_dim, num_heads):
    keys = jax.random.split(key, num_layers + 1)
    dh = model_dim // num_heads
    scale = dh ** (-0.5)   # folded into the Q projection columns at init (free)

    # nn.Embedding(vocab_size + 1, model_dim, padding_idx=0) -> row 0 zeroed
    emb = jax.random.normal(keys[0], (vocab_size + 1, model_dim), jnp.float32) * 0.1
    emb = emb.at[0].set(0.0)

    # PositionalEncoding table, computed exactly as in the PyTorch module
    pe = np.array([[pos / np.power(10000, 2.0 * (j // 2)) / model_dim
                    for j in range(model_dim)] for pos in range(max_seq_len)])
    pe[:, 0::2] = np.sin(pe[:, 0::2])
    pe[:, 1::2] = np.cos(pe[:, 1::2])
    pe = np.concatenate([np.zeros((1, model_dim)), pe], axis=0)
    pos_table = jnp.asarray(pe, dtype=jnp.float32)

    def linear_init(k, din, dout):
        kw, kb = jax.random.split(k)
        w = jax.random.normal(kw, (din, dout), jnp.float32) / np.sqrt(din)
        b = jax.random.normal(kb, (1, dout), jnp.float32) * 0.01
        return w, b

    layers = []
    for li in range(num_layers):
        lk = jax.random.split(keys[li + 1], 6)
        wq, bq = linear_init(lk[0], model_dim, model_dim)
        wk, bk = linear_init(lk[1], model_dim, model_dim)
        wv, bv = linear_init(lk[2], model_dim, model_dim)
        wo, bo = linear_init(lk[3], model_dim, model_dim)
        w1, b1 = linear_init(lk[4], model_dim, ffn_dim)   # Conv1d(model_dim->ffn_dim, k=1)
        w2, b2 = linear_init(lk[5], ffn_dim, model_dim)   # Conv1d(ffn_dim->model_dim, k=1)
        # Fuse Q|K|V into one weight; 1/sqrt(dh) folded into the Q columns.
        wqkv = jnp.concatenate([wq * scale, wk, wv], axis=1)   # [D, 3D]
        bqkv = jnp.concatenate([bq * scale, bk, bv], axis=1)   # [1, 3D]
        layers.append(dict(
            # Matmul weights stored bf16 (MXU operands, halves weight DMA / VMEM);
            # biases and LayerNorm params stay f32 (added after f32 accumulation).
            wqkv=wqkv.astype(jnp.bfloat16), bqkv=bqkv,
            wo=wo.astype(jnp.bfloat16), bo=bo,
            ln1_g=jnp.ones((1, model_dim), jnp.float32),
            ln1_b=jnp.zeros((1, model_dim), jnp.float32),
            w1=w1.astype(jnp.bfloat16), b1=b1,
            w2=w2.astype(jnp.bfloat16), b2=b2,
            ln2_g=jnp.ones((1, model_dim), jnp.float32),
            ln2_b=jnp.zeros((1, model_dim), jnp.float32),
        ))
    return dict(seq_emb=emb, pos_table=pos_table, layers=layers)


# ---------------------------------------------------------------------------
# Encoder forward (thin XLA glue, hot paths in the fused Pallas kernels above)
# ---------------------------------------------------------------------------
def encoder_forward(params, inputs, inputs_len, num_heads):
    B, S = inputs.shape
    D = params["seq_emb"].shape[1]
    dh = D // num_heads
    M = B * S
    tm = _choose_tile_m(M)

    # seq embedding + positional encoding (positions 1..len, 0 for padding;
    # assumes max(inputs_len) == S, as the PyTorch broadcast-add requires)
    output = params["seq_emb"][inputs]                                  # [B,S,D]
    pos_ids = jnp.where(jnp.arange(S)[None, :] < inputs_len[:, None],
                        jnp.arange(1, S + 1)[None, :], 0)
    output = output + params["pos_table"][pos_ids]
    output = output.reshape(M, D)

    # padding_mask(inputs, inputs) as an additive f32 key bias, tiled H times to
    # reproduce torch's attn_mask.repeat(num_heads,1,1): pseudo-head i uses the
    # mask of batch i % B (a known quirk of the reference, preserved faithfully).
    key_bias = jnp.where(inputs == 0, NEG_BIAS, 0.0).astype(jnp.float32)   # [B, S]
    key_bias_rep = jnp.tile(key_bias, (num_heads, 1))[:, None, :]          # [BH,1,S]

    attentions = []
    for p in params["layers"]:
        x2 = output                                           # residual, [M, D] f32

        q, k, v = qkv_projection(x2, p["wqkv"], p["bqkv"], tm)   # 3 x [M, D] bf16
        # Reproduce torch's quirky .view(B*H, -1, dh): a pure row-major (metadata)
        # reshape of each [M, D] buffer -- no column slicing, no transpose.
        q = q.reshape(B * num_heads, S, dh)
        k = k.reshape(B * num_heads, S, dh)
        v = v.reshape(B * num_heads, S, dh)

        ctx, attn = attention_all_heads(q, k, v, key_bias_rep)
        ctx2 = ctx.reshape(M, D)                              # .view(B, -1, H*dh)

        output = out_proj_ffn(ctx2, x2, p["wo"], p["bo"], p["ln1_g"], p["ln1_b"],
                              p["w1"], p["b1"], p["w2"], p["b2"],
                              p["ln2_g"], p["ln2_b"], tm)
        attentions.append(attn)
    return output.reshape(B, S, D), attentions


if __name__ == "__main__":
    vocab_size = 20
    max_seq_len = 8
    num_layers = 2
    model_dim = 32
    num_heads = 4
    ffn_dim = 64

    key = jax.random.PRNGKey(0)
    params = init_params(key, vocab_size, max_seq_len, num_layers,
                         model_dim, ffn_dim, num_heads)

    # batch=2, seq=8; batch 1 has two padding (0) tokens at the end
    inputs = jnp.array([[5, 3, 9, 2, 7, 1, 4, 6],
                        [8, 2, 5, 11, 3, 7, 0, 0]], dtype=jnp.int32)
    inputs_len = jnp.array([8, 6], dtype=jnp.int32)

    fwd = jax.jit(functools.partial(encoder_forward, num_heads=num_heads))
    output, attentions = fwd(params, inputs, inputs_len)
    output = jax.block_until_ready(output)
    attentions = [jax.block_until_ready(a) for a in attentions]

    assert output.shape == (2, max_seq_len, model_dim)
    assert all(a.shape == (2 * num_heads, max_seq_len, max_seq_len) for a in attentions)
    assert bool(jnp.all(jnp.isfinite(output)))
    assert bool(jnp.all(jnp.isfinite(attentions[0])))
    # attention rows should sum to ~1 (approx reciprocal -> loose tolerance)
    row_sums = jnp.sum(attentions[0], axis=-1)
    assert bool(jnp.all(jnp.abs(row_sums - 1.0) < 1e-2))
    print("KERNEL_OK")
</pallas_src>

<mosaic_0001>
module attributes {stable_mosaic.version = 11 : i64} {
  func.func @_qkv_kernel(%arg0: i32, %arg1: memref<16x32xf32, #tpu.memory_space<vmem>>, %arg2: memref<32x96xbf16, #tpu.memory_space<vmem>>, %arg3: memref<1x96xf32, #tpu.memory_space<vmem>>, %arg4: memref<16x32xbf16, #tpu.memory_space<vmem>>, %arg5: memref<16x32xbf16, #tpu.memory_space<vmem>>, %arg6: memref<16x32xbf16, #tpu.memory_space<vmem>>) attributes {dimension_semantics = [#tpu.dimension_semantics<parallel>], iteration_bounds = array<i64: 1>, scalar_prefetch = 0 : i64, scratch_operands = 0 : i64, tpu.core_type = #tpu.core_type<tc>, window_params = [{transform_indices = @transform_0, window_bounds = array<i64: 16, 32>}, {pipeline_mode = #tpu.pipeline_mode<synchronous>, transform_indices = @transform_1, window_bounds = array<i64: 32, 96>}, {pipeline_mode = #tpu.pipeline_mode<synchronous>, transform_indices = @transform_2, window_bounds = array<i64: 1, 96>}, {transform_indices = @transform_3, window_bounds = array<i64: 16, 32>}, {transform_indices = @transform_4, window_bounds = array<i64: 16, 32>}, {transform_indices = @transform_5, window_bounds = array<i64: 16, 32>}]} {
    %c0 = arith.constant 0 : index
    %c0_0 = arith.constant 0 : index
    %0 = vector.load %arg1[%c0, %c0_0] : memref<16x32xf32, #tpu.memory_space<vmem>>, vector<16x32xf32>
    %1 = arith.truncf %0 : vector<16x32xf32> to vector<16x32xbf16>
    %c0_1 = arith.constant 0 : index
    %c0_2 = arith.constant 0 : index
    %2 = vector.load %arg2[%c0_1, %c0_2] : memref<32x96xbf16, #tpu.memory_space<vmem>>, vector<32x96xbf16>
    %cst = arith.constant dense<0.000000e+00> : vector<16x96xf32>
    %3 = tpu.matmul %1, %2, %cst {dimension_numbers = #tpu.dot_dimension_numbers<[1], [0], [0], [1], [0, 0, 1, 1], [], []>} : vector<16x32xbf16>, vector<32x96xbf16>, vector<16x96xf32> -> vector<16x96xf32>
    %c0_3 = arith.constant 0 : index
    %c0_4 = arith.constant 0 : index
    %4 = vector.load %arg3[%c0_3, %c0_4] : memref<1x96xf32, #tpu.memory_space<vmem>>, vector<1x96xf32>
    %5 = vector.broadcast %4 : vector<1x96xf32> to vector<16x96xf32>
    %6 = arith.addf %3, %5 : vector<16x96xf32>
    %7 = vector.extract_strided_slice %6 {offsets = [0, 0], sizes = [16, 32], strides = [1, 1]} : vector<16x96xf32> to vector<16x32xf32>
    %8 = arith.truncf %7 : vector<16x32xf32> to vector<16x32xbf16>
    %c0_5 = arith.constant 0 : index
    %c0_6 = arith.constant 0 : index
    %9 = vector.load %arg4[%c0_5, %c0_6] : memref<16x32xbf16, #tpu.memory_space<vmem>>, vector<16x32xbf16>
    tpu.vector_store %arg4[%c0_5, %c0_6], %8 {strides = array<i32>} : memref<16x32xbf16, #tpu.memory_space<vmem>>, vector<16x32xbf16>,
    %10 = vector.extract_strided_slice %6 {offsets = [0, 32], sizes = [16, 32], strides = [1, 1]} : vector<16x96xf32> to vector<16x32xf32>
    %11 = arith.truncf %10 : vector<16x32xf32> to vector<16x32xbf16>
    %c0_7 = arith.constant 0 : index
    %c0_8 = arith.constant 0 : index
    %12 = vector.load %arg5[%c0_7, %c0_8] : memref<16x32xbf16, #tpu.memory_space<vmem>>, vector<16x32xbf16>
    tpu.vector_store %arg5[%c0_7, %c0_8], %11 {strides = array<i32>} : memref<16x32xbf16, #tpu.memory_space<vmem>>, vector<16x32xbf16>,
    %13 = vector.extract_strided_slice %6 {offsets = [0, 64], sizes = [16, 32], strides = [1, 1]} : vector<16x96xf32> to vector<16x32xf32>
    %14 = arith.truncf %13 : vector<16x32xf32> to vector<16x32xbf16>
    %c0_9 = arith.constant 0 : index
    %c0_10 = arith.constant 0 : index
    %15 = vector.load %arg6[%c0_9, %c0_10] : memref<16x32xbf16, #tpu.memory_space<vmem>>, vector<16x32xbf16>
    tpu.vector_store %arg6[%c0_9, %c0_10], %14 {strides = array<i32>} : memref<16x32xbf16, #tpu.memory_space<vmem>>, vector<16x32xbf16>,
    return
  }
  func.func @transform_0(%arg0: i32) -> (i32, i32) {
    %c0_i32 = arith.constant 0 : i32
    %c0_i32_0 = arith.constant 0 : i32
    return %arg0, %c0_i32 : i32, i32
  }
  func.func @transform_1(%arg0: i32) -> (i32, i32) {
    %c0_i32 = arith.constant 0 : i32
    %c0_i32_0 = arith.constant 0 : i32
    %c0_i32_1 = arith.constant 0 : i32
    return %c0_i32, %c0_i32_0 : i32, i32
  }
  func.func @transform_2(%arg0: i32) -> (i32, i32) {
    %c0_i32 = arith.constant 0 : i32
    %c0_i32_0 = arith.constant 0 : i32
    %c0_i32_1 = arith.constant 0 : i32
    return %c0_i32, %c0_i32_0 : i32, i32
  }
  func.func @transform_3(%arg0: i32) -> (i32, i32) {
    %c0_i32 = arith.constant 0 : i32
    %c0_i32_0 = arith.constant 0 : i32
    return %arg0, %c0_i32 : i32, i32
  }
  func.func @transform_4(%arg0: i32) -> (i32, i32) {
    %c0_i32 = arith.constant 0 : i32
    %c0_i32_0 = arith.constant 0 : i32
    return %arg0, %c0_i32 : i32, i32
  }
  func.func @transform_5(%arg0: i32) -> (i32, i32) {
    %c0_i32 = arith.constant 0 : i32
    %c0_i32_0 = arith.constant 0 : i32
    return %arg0, %c0_i32 : i32, i32
  }
}

module attributes {stable_mosaic.version = 11 : i64} {
  func.func @_attention_kernel(%arg0: i32, %arg1: memref<1x8x8xbf16, #tpu.memory_space<vmem>>, %arg2: memref<1x8x8xbf16, #tpu.memory_space<vmem>>, %arg3: memref<1x8x8xbf16, #tpu.memory_space<vmem>>, %arg4: memref<1x1x8xf32, #tpu.memory_space<vmem>>, %arg5: memref<1x8x8xbf16, #tpu.memory_space<vmem>>, %arg6: memref<1x8x8xf32, #tpu.memory_space<vmem>>) attributes {dimension_semantics = [#tpu.dimension_semantics<parallel>], iteration_bounds = array<i64: 8>, scalar_prefetch = 0 : i64, scratch_operands = 0 : i64, tpu.core_type = #tpu.core_type<tc>, window_params = [{transform_indices = @transform_0, window_bounds = array<i64: 1, 8, 8>}, {transform_indices = @transform_1, window_bounds = array<i64: 1, 8, 8>}, {transform_indices = @transform_2, window_bounds = array<i64: 1, 8, 8>}, {transform_indices = @transform_3, window_bounds = array<i64: 1, 1, 8>}, {transform_indices = @transform_4, window_bounds = array<i64: 1, 8, 8>}, {transform_indices = @transform_5, window_bounds = array<i64: 1, 8, 8>}]} {
    %c0 = arith.constant 0 : index
    %c0_0 = arith.constant 0 : index
    %c0_1 = arith.constant 0 : index
    %0 = vector.load %arg1[%c0, %c0_0, %c0_1] : memref<1x8x8xbf16, #tpu.memory_space<vmem>>, vector<1x8x8xbf16>
    %1 = vector.shape_cast %0 : vector<1x8x8xbf16> to vector<8x8xbf16>
    %c0_2 = arith.constant 0 : index
    %c0_3 = arith.constant 0 : index
    %c0_4 = arith.constant 0 : index
    %2 = vector.load %arg2[%c0_2, %c0_3, %c0_4] : memref<1x8x8xbf16, #tpu.memory_space<vmem>>, vector<1x8x8xbf16>
    %3 = vector.shape_cast %2 : vector<1x8x8xbf16> to vector<8x8xbf16>
    %c0_5 = arith.constant 0 : index
    %c0_6 = arith.constant 0 : index
    %c0_7 = arith.constant 0 : index
    %4 = vector.load %arg3[%c0_5, %c0_6, %c0_7] : memref<1x8x8xbf16, #tpu.memory_space<vmem>>, vector<1x8x8xbf16>
    %5 = vector.shape_cast %4 : vector<1x8x8xbf16> to vector<8x8xbf16>
    %cst = arith.constant dense<0.000000e+00> : vector<8x8xf32>
    %6 = tpu.matmul %1, %3, %cst {dimension_numbers = #tpu.dot_dimension_numbers<[1], [1], [0], [0], [0, 0, 1, 0], [], []>} : vector<8x8xbf16>, vector<8x8xbf16>, vector<8x8xf32> -> vector<8x8xf32>
    %c0_8 = arith.constant 0 : index
    %c0_9 = arith.constant 0 : index
    %c0_10 = arith.constant 0 : index
    %7 = vector.load %arg4[%c0_8, %c0_9, %c0_10] : memref<1x1x8xf32, #tpu.memory_space<vmem>>, vector<1x1x8xf32>
    %8 = vector.shape_cast %7 : vector<1x1x8xf32> to vector<1x8xf32>
    %9 = vector.broadcast %8 : vector<1x8xf32> to vector<8x8xf32>
    %10 = arith.addf %6, %9 : vector<8x8xf32>
    %cst_11 = arith.constant dense<0xFF800000> : vector<8xf32>
    %11 = vector.multi_reduction <maximumf>, %10, %cst_11 [1] : vector<8x8xf32> to vector<8xf32>
    %12 = vector.shape_cast %11 : vector<8xf32> to vector<8x1xf32>
    %13 = vector.broadcast %12 : vector<8x1xf32> to vector<8x8xf32>
    %14 = arith.subf %10, %13 : vector<8x8xf32>
    %15 = math.exp %14 : vector<8x8xf32>
    %cst_12 = arith.constant dense<0.000000e+00> : vector<8xf32>
    %16 = vector.multi_reduction <add>, %15, %cst_12 [1] : vector<8x8xf32> to vector<8xf32>
    %17 = vector.shape_cast %16 : vector<8xf32> to vector<8x1xf32>
    %18 = tpu.reciprocal %17 {approx = true} : vector<8x1xf32> -> vector<8x1xf32>
    %19 = vector.broadcast %18 : vector<8x1xf32> to vector<8x8xf32>
    %20 = arith.mulf %15, %19 : vector<8x8xf32>
    %c0_13 = arith.constant 0 : index
    %c0_14 = arith.constant 0 : index
    %c0_15 = arith.constant 0 : index
    %21 = vector.load %arg6[%c0_13, %c0_14, %c0_15] : memref<1x8x8xf32, #tpu.memory_space<vmem>>, vector<1x8x8xf32>
    %22 = vector.shape_cast %21 : vector<1x8x8xf32> to vector<8x8xf32>
    %23 = vector.shape_cast %20 : vector<8x8xf32> to vector<1x8x8xf32>
    tpu.vector_store %arg6[%c0_13, %c0_14, %c0_15], %23 {strides = array<i32>} : memref<1x8x8xf32, #tpu.memory_space<vmem>>, vector<1x8x8xf32>,
    %24 = arith.truncf %20 : vector<8x8xf32> to vector<8x8xbf16>
    %cst_16 = arith.constant dense<0.000000e+00> : vector<8x8xf32>
    %25 = tpu.matmul %24, %5, %cst_16 {dimension_numbers = #tpu.dot_dimension_numbers<[1], [0], [0], [1], [0, 0, 1, 1], [], []>} : vector<8x8xbf16>, vector<8x8xbf16>, vector<8x8xf32> -> vector<8x8xf32>
    %26 = arith.truncf %25 : vector<8x8xf32> to vector<8x8xbf16>
    %c0_17 = arith.constant 0 : index
    %c0_18 = arith.constant 0 : index
    %c0_19 = arith.constant 0 : index
    %27 = vector.load %arg5[%c0_17, %c0_18, %c0_19] : memref<1x8x8xbf16, #tpu.memory_space<vmem>>, vector<1x8x8xbf16>
    %28 = vector.shape_cast %27 : vector<1x8x8xbf16> to vector<8x8xbf16>
    %29 = vector.shape_cast %26 : vector<8x8xbf16> to vector<1x8x8xbf16>
    tpu.vector_store %arg5[%c0_17, %c0_18, %c0_19], %29 {strides = array<i32>} : memref<1x8x8xbf16, #tpu.memory_space<vmem>>, vector<1x8x8xbf16>,
    return
  }
  func.func @transform_0(%arg0: i32) -> (i32, i32, i32) {
    %c0_i32 = arith.constant 0 : i32
    %c0_i32_0 = arith.constant 0 : i32
    %c0_i32_1 = arith.constant 0 : i32
    return %arg0, %c0_i32, %c0_i32_0 : i32, i32, i32
  }
  func.func @transform_1(%arg0: i32) -> (i32, i32, i32) {
    %c0_i32 = arith.constant 0 : i32
    %c0_i32_0 = arith.constant 0 : i32
    %c0_i32_1 = arith.constant 0 : i32
    return %arg0, %c0_i32, %c0_i32_0 : i32, i32, i32
  }
  func.func @transform_2(%arg0: i32) -> (i32, i32, i32) {
    %c0_i32 = arith.constant 0 : i32
    %c0_i32_0 = arith.constant 0 : i32
    %c0_i32_1 = arith.constant 0 : i32
    return %arg0, %c0_i32, %c0_i32_0 : i32, i32, i32
  }
  func.func @transform_3(%arg0: i32) -> (i32, i32, i32) {
    %c0_i32 = arith.constant 0 : i32
    %c0_i32_0 = arith.constant 0 : i32
    %c0_i32_1 = arith.constant 0 : i32
    return %arg0, %c0_i32, %c0_i32_0 : i32, i32, i32
  }
  func.func @transform_4(%arg0: i32) -> (i32, i32, i32) {
    %c0_i32 = arith.constant 0 : i32
    %c0_i32_0 = arith.constant 0 : i32
    %c0_i32_1 = arith.constant 0 : i32
    return %arg0, %c0_i32, %c0_i32_0 : i32, i32, i32
  }
  func.func @transform_5(%arg0: i32) -> (i32, i32, i32) {
    %c0_i32 = arith.constant 0 : i32
    %c0_i32_0 = arith.constant 0 : i32
    %c0_i32_1 = arith.constant 0 : i32
    return %arg0, %c0_i32, %c0_i32_0 : i32, i32, i32
  }
}

module attributes {stable_mosaic.version = 11 : i64} {
  func.func @_out_ffn_kernel(%arg0: i32, %arg1: memref<16x32xbf16, #tpu.memory_space<vmem>>, %arg2: memref<16x32xf32, #tpu.memory_space<vmem>>, %arg3: memref<32x32xbf16, #tpu.memory_space<vmem>>, %arg4: memref<1x32xf32, #tpu.memory_space<vmem>>, %arg5: memref<1x32xf32, #tpu.memory_space<vmem>>, %arg6: memref<1x32xf32, #tpu.memory_space<vmem>>, %arg7: memref<32x64xbf16, #tpu.memory_space<vmem>>, %arg8: memref<1x64xf32, #tpu.memory_space<vmem>>, %arg9: memref<64x32xbf16, #tpu.memory_space<vmem>>, %arg10: memref<1x32xf32, #tpu.memory_space<vmem>>, %arg11: memref<1x32xf32, #tpu.memory_space<vmem>>, %arg12: memref<1x32xf32, #tpu.memory_space<vmem>>, %arg13: memref<16x32xf32, #tpu.memory_space<vmem>>) attributes {dimension_semantics = [#tpu.dimension_semantics<parallel>], iteration_bounds = array<i64: 1>, scalar_prefetch = 0 : i64, scratch_operands = 0 : i64, tpu.core_type = #tpu.core_type<tc>, window_params = [{transform_indices = @transform_0, window_bounds = array<i64: 16, 32>}, {transform_indices = @transform_1, window_bounds = array<i64: 16, 32>}, {pipeline_mode = #tpu.pipeline_mode<synchronous>, transform_indices = @transform_2, window_bounds = array<i64: 32, 32>}, {pipeline_mode = #tpu.pipeline_mode<synchronous>, transform_indices = @transform_3, window_bounds = array<i64: 1, 32>}, {pipeline_mode = #tpu.pipeline_mode<synchronous>, transform_indices = @transform_4, window_bounds = array<i64: 1, 32>}, {pipeline_mode = #tpu.pipeline_mode<synchronous>, transform_indices = @transform_5, window_bounds = array<i64: 1, 32>}, {pipeline_mode = #tpu.pipeline_mode<synchronous>, transform_indices = @transform_6, window_bounds = array<i64: 32, 64>}, {pipeline_mode = #tpu.pipeline_mode<synchronous>, transform_indices = @transform_7, window_bounds = array<i64: 1, 64>}, {pipeline_mode = #tpu.pipeline_mode<synchronous>, transform_indices = @transform_8, window_bounds = array<i64: 64, 32>}, {pipeline_mode = #tpu.pipeline_mode<synchronous>, transform_indices = @transform_9, window_bounds = array<i64: 1, 32>}, {pipeline_mode = #tpu.pipeline_mode<synchronous>, transform_indices = @transform_10, window_bounds = array<i64: 1, 32>}, {pipeline_mode = #tpu.pipeline_mode<synchronous>, transform_indices = @transform_11, window_bounds = array<i64: 1, 32>}, {transform_indices = @transform_12, window_bounds = array<i64: 16, 32>}]} {
    %c0 = arith.constant 0 : index
    %c0_0 = arith.constant 0 : index
    %0 = vector.load %arg1[%c0, %c0_0] : memref<16x32xbf16, #tpu.memory_space<vmem>>, vector<16x32xbf16>
    %c0_1 = arith.constant 0 : index
    %c0_2 = arith.constant 0 : index
    %1 = vector.load %arg3[%c0_1, %c0_2] : memref<32x32xbf16, #tpu.memory_space<vmem>>, vector<32x32xbf16>
    %cst = arith.constant dense<0.000000e+00> : vector<16x32xf32>
    %2 = tpu.matmul %0, %1, %cst {dimension_numbers = #tpu.dot_dimension_numbers<[1], [0], [0], [1], [0, 0, 1, 1], [], []>} : vector<16x32xbf16>, vector<32x32xbf16>, vector<16x32xf32> -> vector<16x32xf32>
    %c0_3 = arith.constant 0 : index
    %c0_4 = arith.constant 0 : index
    %3 = vector.load %arg4[%c0_3, %c0_4] : memref<1x32xf32, #tpu.memory_space<vmem>>, vector<1x32xf32>
    %4 = vector.broadcast %3 : vector<1x32xf32> to vector<16x32xf32>
    %5 = arith.addf %2, %4 : vector<16x32xf32>
    %c0_5 = arith.constant 0 : index
    %c0_6 = arith.constant 0 : index
    %6 = vector.load %arg2[%c0_5, %c0_6] : memref<16x32xf32, #tpu.memory_space<vmem>>, vector<16x32xf32>
    %7 = arith.addf %5, %6 : vector<16x32xf32>
    %c0_7 = arith.constant 0 : index
    %c0_8 = arith.constant 0 : index
    %8 = vector.load %arg5[%c0_7, %c0_8] : memref<1x32xf32, #tpu.memory_space<vmem>>, vector<1x32xf32>
    %c0_9 = arith.constant 0 : index
    %c0_10 = arith.constant 0 : index
    %9 = vector.load %arg6[%c0_9, %c0_10] : memref<1x32xf32, #tpu.memory_space<vmem>>, vector<1x32xf32>
    %cst_11 = arith.constant dense<0.000000e+00> : vector<16xf32>
    %10 = vector.multi_reduction <add>, %7, %cst_11 [1] : vector<16x32xf32> to vector<16xf32>
    %11 = vector.shape_cast %10 : vector<16xf32> to vector<16x1xf32>
    %cst_12 = arith.constant 3.200000e+01 : f32
    %12 = vector.broadcast %cst_12 : f32 to vector<16x1xf32>
    %13 = arith.divf %11, %12 : vector<16x1xf32>
    %14 = arith.mulf %7, %7 : vector<16x32xf32>
    %cst_13 = arith.constant dense<0.000000e+00> : vector<16xf32>
    %15 = vector.multi_reduction <add>, %14, %cst_13 [1] : vector<16x32xf32> to vector<16xf32>
    %16 = vector.shape_cast %15 : vector<16xf32> to vector<16x1xf32>
    %cst_14 = arith.constant 3.200000e+01 : f32
    %17 = vector.broadcast %cst_14 : f32 to vector<16x1xf32>
    %18 = arith.divf %16, %17 : vector<16x1xf32>
    %19 = arith.mulf %13, %13 : vector<16x1xf32>
    %20 = arith.subf %18, %19 : vector<16x1xf32>
    %21 = vector.broadcast %13 : vector<16x1xf32> to vector<16x32xf32>
    %22 = arith.subf %7, %21 : vector<16x32xf32>
    %cst_15 = arith.constant 9.99999974E-6 : f32
    %23 = vector.broadcast %cst_15 : f32 to vector<16x1xf32>
    %24 = arith.addf %20, %23 : vector<16x1xf32>
    %25 = math.rsqrt %24 : vector<16x1xf32>
    %26 = vector.broadcast %25 : vector<16x1xf32> to vector<16x32xf32>
    %27 = arith.mulf %22, %26 : vector<16x32xf32>
    %28 = vector.broadcast %8 : vector<1x32xf32> to vector<16x32xf32>
    %29 = arith.mulf %27, %28 : vector<16x32xf32>
    %30 = vector.broadcast %9 : vector<1x32xf32> to vector<16x32xf32>
    %31 = arith.addf %29, %30 : vector<16x32xf32>
    %32 = arith.truncf %31 : vector<16x32xf32> to vector<16x32xbf16>
    %c0_16 = arith.constant 0 : index
    %c0_17 = arith.constant 0 : index
    %33 = vector.load %arg7[%c0_16, %c0_17] : memref<32x64xbf16, #tpu.memory_space<vmem>>, vector<32x64xbf16>
    %cst_18 = arith.constant dense<0.000000e+00> : vector<16x64xf32>
    %34 = tpu.matmul %32, %33, %cst_18 {dimension_numbers = #tpu.dot_dimension_numbers<[1], [0], [0], [1], [0, 0, 1, 1], [], []>} : vector<16x32xbf16>, vector<32x64xbf16>, vector<16x64xf32> -> vector<16x64xf32>
    %c0_19 = arith.constant 0 : index
    %c0_20 = arith.constant 0 : index
    %35 = vector.load %arg8[%c0_19, %c0_20] : memref<1x64xf32, #tpu.memory_space<vmem>>, vector<1x64xf32>
    %36 = vector.broadcast %35 : vector<1x64xf32> to vector<16x64xf32>
    %37 = arith.addf %34, %36 : vector<16x64xf32>
    %cst_21 = arith.constant 0.000000e+00 : f32
    %38 = vector.broadcast %cst_21 : f32 to vector<16x64xf32>
    %39 = arith.maximumf %37, %38 : vector<16x64xf32>
    %40 = arith.truncf %39 : vector<16x64xf32> to vector<16x64xbf16>
    %c0_22 = arith.constant 0 : index
    %c0_23 = arith.constant 0 : index
    %41 = vector.load %arg9[%c0_22, %c0_23] : memref<64x32xbf16, #tpu.memory_space<vmem>>, vector<64x32xbf16>
    %cst_24 = arith.constant dense<0.000000e+00> : vector<16x32xf32>
    %42 = tpu.matmul %40, %41, %cst_24 {dimension_numbers = #tpu.dot_dimension_numbers<[1], [0], [0], [1], [0, 0, 1, 1], [], []>} : vector<16x64xbf16>, vector<64x32xbf16>, vector<16x32xf32> -> vector<16x32xf32>
    %c0_25 = arith.constant 0 : index
    %c0_26 = arith.constant 0 : index
    %43 = vector.load %arg10[%c0_25, %c0_26] : memref<1x32xf32, #tpu.memory_space<vmem>>, vector<1x32xf32>
    %44 = vector.broadcast %43 : vector<1x32xf32> to vector<16x32xf32>
    %45 = arith.addf %42, %44 : vector<16x32xf32>
    %46 = arith.addf %45, %31 : vector<16x32xf32>
    %c0_27 = arith.constant 0 : index
    %c0_28 = arith.constant 0 : index
    %47 = vector.load %arg11[%c0_27, %c0_28] : memref<1x32xf32, #tpu.memory_space<vmem>>, vector<1x32xf32>
    %c0_29 = arith.constant 0 : index
    %c0_30 = arith.constant 0 : index
    %48 = vector.load %arg12[%c0_29, %c0_30] : memref<1x32xf32, #tpu.memory_space<vmem>>, vector<1x32xf32>
    %cst_31 = arith.constant dense<0.000000e+00> : vector<16xf32>
    %49 = vector.multi_reduction <add>, %46, %cst_31 [1] : vector<16x32xf32> to vector<16xf32>
    %50 = vector.shape_cast %49 : vector<16xf32> to vector<16x1xf32>
    %cst_32 = arith.constant 3.200000e+01 : f32
    %51 = vector.broadcast %cst_32 : f32 to vector<16x1xf32>
    %52 = arith.divf %50, %51 : vector<16x1xf32>
    %53 = arith.mulf %46, %46 : vector<16x32xf32>
    %cst_33 = arith.constant dense<0.000000e+00> : vector<16xf32>
    %54 = vector.multi_reduction <add>, %53, %cst_33 [1] : vector<16x32xf32> to vector<16xf32>
    %55 = vector.shape_cast %54 : vector<16xf32> to vector<16x1xf32>
    %cst_34 = arith.constant 3.200000e+01 : f32
    %56 = vector.broadcast %cst_34 : f32 to vector<16x1xf32>
    %57 = arith.divf %55, %56 : vector<16x1xf32>
    %58 = arith.mulf %52, %52 : vector<16x1xf32>
    %59 = arith.subf %57, %58 : vector<16x1xf32>
    %60 = vector.broadcast %52 : vector<16x1xf32> to vector<16x32xf32>
    %61 = arith.subf %46, %60 : vector<16x32xf32>
    %cst_35 = arith.constant 9.99999974E-6 : f32
    %62 = vector.broadcast %cst_35 : f32 to vector<16x1xf32>
    %63 = arith.addf %59, %62 : vector<16x1xf32>
    %64 = math.rsqrt %63 : vector<16x1xf32>
    %65 = vector.broadcast %64 : vector<16x1xf32> to vector<16x32xf32>
    %66 = arith.mulf %61, %65 : vector<16x32xf32>
    %67 = vector.broadcast %47 : vector<1x32xf32> to vector<16x32xf32>
    %68 = arith.mulf %66, %67 : vector<16x32xf32>
    %69 = vector.broadcast %48 : vector<1x32xf32> to vector<16x32xf32>
    %70 = arith.addf %68, %69 : vector<16x32xf32>
    %c0_36 = arith.constant 0 : index
    %c0_37 = arith.constant 0 : index
    %71 = vector.load %arg13[%c0_36, %c0_37] : memref<16x32xf32, #tpu.memory_space<vmem>>, vector<16x32xf32>
    tpu.vector_store %arg13[%c0_36, %c0_37], %70 {strides = array<i32>} : memref<16x32xf32, #tpu.memory_space<vmem>>, vector<16x32xf32>,
    return
  }
  func.func @transform_0(%arg0: i32) -> (i32, i32) {
    %c0_i32 = arith.constant 0 : i32
    %c0_i32_0 = arith.constant 0 : i32
    return %arg0, %c0_i32 : i32, i32
  }
  func.func @transform_1(%arg0: i32) -> (i32, i32) {
    %c0_i32 = arith.constant 0 : i32
    %c0_i32_0 = arith.constant 0 : i32
    return %arg0, %c0_i32 : i32, i32
  }
  func.func @transform_2(%arg0: i32) -> (i32, i32) {
    %c0_i32 = arith.constant 0 : i32
    %c0_i32_0 = arith.constant 0 : i32
    %c0_i32_1 = arith.constant 0 : i32
    return %c0_i32, %c0_i32_0 : i32, i32
  }
  func.func @transform_3(%arg0: i32) -> (i32, i32) {
    %c0_i32 = arith.constant 0 : i32
    %c0_i32_0 = arith.constant 0 : i32
    %c0_i32_1 = arith.constant 0 : i32
    return %c0_i32, %c0_i32_0 : i32, i32
  }
  func.func @transform_4(%arg0: i32) -> (i32, i32) {
    %c0_i32 = arith.constant 0 : i32
    %c0_i32_0 = arith.constant 0 : i32
    %c0_i32_1 = arith.constant 0 : i32
    return %c0_i32, %c0_i32_0 : i32, i32
  }
  func.func @transform_5(%arg0: i32) -> (i32, i32) {
    %c0_i32 = arith.constant 0 : i32
    %c0_i32_0 = arith.constant 0 : i32
    %c0_i32_1 = arith.constant 0 : i32
    return %c0_i32, %c0_i32_0 : i32, i32
  }
  func.func @transform_6(%arg0: i32) -> (i32, i32) {
    %c0_i32 = arith.constant 0 : i32
    %c0_i32_0 = arith.constant 0 : i32
    %c0_i32_1 = arith.constant 0 : i32
    return %c0_i32, %c0_i32_0 : i32, i32
  }
  func.func @transform_7(%arg0: i32) -> (i32, i32) {
    %c0_i32 = arith.constant 0 : i32
    %c0_i32_0 = arith.constant 0 : i32
    %c0_i32_1 = arith.constant 0 : i32
    return %c0_i32, %c0_i32_0 : i32, i32
  }
  func.func @transform_8(%arg0: i32) -> (i32, i32) {
    %c0_i32 = arith.constant 0 : i32
    %c0_i32_0 = arith.constant 0 : i32
    %c0_i32_1 = arith.constant 0 : i32
    return %c0_i32, %c0_i32_0 : i32, i32
  }
  func.func @transform_9(%arg0: i32) -> (i32, i32) {
    %c0_i32 = arith.constant 0 : i32
    %c0_i32_0 = arith.constant 0 : i32
    %c0_i32_1 = arith.constant 0 : i32
    return %c0_i32, %c0_i32_0 : i32, i32
  }
  func.func @transform_10(%arg0: i32) -> (i32, i32) {
    %c0_i32 = arith.constant 0 : i32
    %c0_i32_0 = arith.constant 0 : i32
    %c0_i32_1 = arith.constant 0 : i32
    return %c0_i32, %c0_i32_0 : i32, i32
  }
  func.func @transform_11(%arg0: i32) -> (i32, i32) {
    %c0_i32 = arith.constant 0 : i32
    %c0_i32_0 = arith.constant 0 : i32
    %c0_i32_1 = arith.constant 0 : i32
    return %c0_i32, %c0_i32_0 : i32, i32
  }
  func.func @transform_12(%arg0: i32) -> (i32, i32) {
    %c0_i32 = arith.constant 0 : i32
    %c0_i32_0 = arith.constant 0 : i32
    return %arg0, %c0_i32 : i32, i32
  }
}

module attributes {stable_mosaic.version = 11 : i64} {
  func.func @_out_ffn_kernel(%arg0: i32, %arg1: memref<16x32xbf16, #tpu.memory_space<vmem>>, %arg2: memref<16x32xf32, #tpu.memory_space<vmem>>, %arg3: memref<32x32xbf16, #tpu.memory_space<vmem>>, %arg4: memref<1x32xf32, #tpu.memory_space<vmem>>, %arg5: memref<1x32xf32, #tpu.memory_space<vmem>>, %arg6: memref<1x32xf32, #tpu.memory_space<vmem>>, %arg7: memref<32x64xbf16, #tpu.memory_space<vmem>>, %arg8: memref<1x64xf32, #tpu.memory_space<vmem>>, %arg9: memref<64x32xbf16, #tpu.memory_space<vmem>>, %arg10: memref<1x32xf32, #tpu.memory_space<vmem>>, %arg11: memref<1x32xf32, #tpu.memory_space<vmem>>, %arg12: memref<1x32xf32, #tpu.memory_space<vmem>>, %arg13: memref<16x32xf32, #tpu.memory_space<vmem>>) attributes {dimension_semantics = [#tpu.dimension_semantics<parallel>], iteration_bounds = array<i64: 1>, scalar_prefetch = 0 : i64, scratch_operands = 0 : i64, tpu.core_type = #tpu.core_type<tc>, window_params = [{transform_indices = @transform_0, window_bounds = array<i64: 16, 32>}, {transform_indices = @transform_1, window_bounds = array<i64: 16, 32>}, {pipeline_mode = #tpu.pipeline_mode<synchronous>, transform_indices = @transform_2, window_bounds = array<i64: 32, 32>}, {pipeline_mode = #tpu.pipeline_mode<synchronous>, transform_indices = @transform_3, window_bounds = array<i64: 1, 32>}, {pipeline_mode = #tpu.pipeline_mode<synchronous>, transform_indices = @transform_4, window_bounds = array<i64: 1, 32>}, {pipeline_mode = #tpu.pipeline_mode<synchronous>, transform_indices = @transform_5, window_bounds = array<i64: 1, 32>}, {pipeline_mode = #tpu.pipeline_mode<synchronous>, transform_indices = @transform_6, window_bounds = array<i64: 32, 64>}, {pipeline_mode = #tpu.pipeline_mode<synchronous>, transform_indices = @transform_7, window_bounds = array<i64: 1, 64>}, {pipeline_mode = #tpu.pipeline_mode<synchronous>, transform_indices = @transform_8, window_bounds = array<i64: 64, 32>}, {pipeline_mode = #tpu.pipeline_mode<synchronous>, transform_indices = @transform_9, window_bounds = array<i64: 1, 32>}, {pipeline_mode = #tpu.pipeline_mode<synchronous>, transform_indices = @transform_10, window_bounds = array<i64: 1, 32>}, {pipeline_mode = #tpu.pipeline_mode<synchronous>, transform_indices = @transform_11, window_bounds = array<i64: 1, 32>}, {transform_indices = @transform_12, window_bounds = array<i64: 16, 32>}]} {
    %c0 = arith.constant 0 : index
    %c0_0 = arith.constant 0 : index
    %0 = vector.load %arg1[%c0, %c0_0] : memref<16x32xbf16, #tpu.memory_space<vmem>>, vector<16x32xbf16>
    %c0_1 = arith.constant 0 : index
    %c0_2 = arith.constant 0 : index
    %1 = vector.load %arg3[%c0_1, %c0_2] : memref<32x32xbf16, #tpu.memory_space<vmem>>, vector<32x32xbf16>
    %cst = arith.constant dense<0.000000e+00> : vector<16x32xf32>
    %2 = tpu.matmul %0, %1, %cst {dimension_numbers = #tpu.dot_dimension_numbers<[1], [0], [0], [1], [0, 0, 1, 1], [], []>} : vector<16x32xbf16>, vector<32x32xbf16>, vector<16x32xf32> -> vector<16x32xf32>
    %c0_3 = arith.constant 0 : index
    %c0_4 = arith.constant 0 : index
    %3 = vector.load %arg4[%c0_3, %c0_4] : memref<1x32xf32, #tpu.memory_space<vmem>>, vector<1x32xf32>
    %4 = vector.broadcast %3 : vector<1x32xf32> to vector<16x32xf32>
    %5 = arith.addf %2, %4 : vector<16x32xf32>
    %c0_5 = arith.constant 0 : index
    %c0_6 = arith.constant 0 : index
    %6 = vector.load %arg2[%c0_5, %c0_6] : memref<16x32xf32, #tpu.memory_space<vmem>>, vector<16x32xf32>
    %7 = arith.addf %5, %6 : vector<16x32xf32>
    %c0_7 = arith.constant 0 : index
    %c0_8 = arith.constant 0 : index
    %8 = vector.load %arg5[%c0_7, %c0_8] : memref<1x32xf32, #tpu.memory_space<vmem>>, vector<1x32xf32>
    %c0_9 = arith.constant 0 : index
    %c0_10 = arith.constant 0 : index
    %9 = vector.load %arg6[%c0_9, %c0_10] : memref<1x32xf32, #tpu.memory_space<vmem>>, vector<1x32xf32>
    %cst_11 = arith.constant dense<0.000000e+00> : vector<16xf32>
    %10 = vector.multi_reduction <add>, %7, %cst_11 [1] : vector<16x32xf32> to vector<16xf32>
    %11 = vector.shape_cast %10 : vector<16xf32> to vector<16x1xf32>
    %cst_12 = arith.constant 3.200000e+01 : f32
    %12 = vector.broadcast %cst_12 : f32 to vector<16x1xf32>
    %13 = arith.divf %11, %12 : vector<16x1xf32>
    %14 = arith.mulf %7, %7 : vector<16x32xf32>
    %cst_13 = arith.constant dense<0.000000e+00> : vector<16xf32>
    %15 = vector.multi_reduction <add>, %14, %cst_13 [1] : vector<16x32xf32> to vector<16xf32>
    %16 = vector.shape_cast %15 : vector<16xf32> to vector<16x1xf32>
    %cst_14 = arith.constant 3.200000e+01 : f32
    %17 = vector.broadcast %cst_14 : f32 to vector<16x1xf32>
    %18 = arith.divf %16, %17 : vector<16x1xf32>
    %19 = arith.mulf %13, %13 : vector<16x1xf32>
    %20 = arith.subf %18, %19 : vector<16x1xf32>
    %21 = vector.broadcast %13 : vector<16x1xf32> to vector<16x32xf32>
    %22 = arith.subf %7, %21 : vector<16x32xf32>
    %cst_15 = arith.constant 9.99999974E-6 : f32
    %23 = vector.broadcast %cst_15 : f32 to vector<16x1xf32>
    %24 = arith.addf %20, %23 : vector<16x1xf32>
    %25 = math.rsqrt %24 : vector<16x1xf32>
    %26 = vector.broadcast %25 : vector<16x1xf32> to vector<16x32xf32>
    %27 = arith.mulf %22, %26 : vector<16x32xf32>
    %28 = vector.broadcast %8 : vector<1x32xf32> to vector<16x32xf32>
    %29 = arith.mulf %27, %28 : vector<16x32xf32>
    %30 = vector.broadcast %9 : vector<1x32xf32> to vector<16x32xf32>
    %31 = arith.addf %29, %30 : vector<16x32xf32>
    %32 = arith.truncf %31 : vector<16x32xf32> to vector<16x32xbf16>
    %c0_16 = arith.constant 0 : index
    %c0_17 = arith.constant 0 : index
    %33 = vector.load %arg7[%c0_16, %c0_17] : memref<32x64xbf16, #tpu.memory_space<vmem>>, vector<32x64xbf16>
    %cst_18 = arith.constant dense<0.000000e+00> : vector<16x64xf32>
    %34 = tpu.matmul %32, %33, %cst_18 {dimension_numbers = #tpu.dot_dimension_numbers<[1], [0], [0], [1], [0, 0, 1, 1], [], []>} : vector<16x32xbf16>, vector<32x64xbf16>, vector<16x64xf32> -> vector<16x64xf32>
    %c0_19 = arith.constant 0 : index
    %c0_20 = arith.constant 0 : index
    %35 = vector.load %arg8[%c0_19, %c0_20] : memref<1x64xf32, #tpu.memory_space<vmem>>, vector<1x64xf32>
    %36 = vector.broadcast %35 : vector<1x64xf32> to vector<16x64xf32>
    %37 = arith.addf %34, %36 : vector<16x64xf32>
    %cst_21 = arith.constant 0.000000e+00 : f32
    %38 = vector.broadcast %cst_21 : f32 to vector<16x64xf32>
    %39 = arith.maximumf %37, %38 : vector<16x64xf32>
    %40 = arith.truncf %39 : vector<16x64xf32> to vector<16x64xbf16>
    %c0_22 = arith.constant 0 : index
    %c0_23 = arith.constant 0 : index
    %41 = vector.load %arg9[%c0_22, %c0_23] : memref<64x32xbf16, #tpu.memory_space<vmem>>, vector<64x32xbf16>
    %cst_24 = arith.constant dense<0.000000e+00> : vector<16x32xf32>
    %42 = tpu.matmul %40, %41, %cst_24 {dimension_numbers = #tpu.dot_dimension_numbers<[1], [0], [0], [1], [0, 0, 1, 1], [], []>} : vector<16x64xbf16>, vector<64x32xbf16>, vector<16x32xf32> -> vector<16x32xf32>
    %c0_25 = arith.constant 0 : index
    %c0_26 = arith.constant 0 : index
    %43 = vector.load %arg10[%c0_25, %c0_26] : memref<1x32xf32, #tpu.memory_space<vmem>>, vector<1x32xf32>
    %44 = vector.broadcast %43 : vector<1x32xf32> to vector<16x32xf32>
    %45 = arith.addf %42, %44 : vector<16x32xf32>
    %46 = arith.addf %45, %31 : vector<16x32xf32>
    %c0_27 = arith.constant 0 : index
    %c0_28 = arith.constant 0 : index
    %47 = vector.load %arg11[%c0_27, %c0_28] : memref<1x32xf32, #tpu.memory_space<vmem>>, vector<1x32xf32>
    %c0_29 = arith.constant 0 : index
    %c0_30 = arith.constant 0 : index
    %48 = vector.load %arg12[%c0_29, %c0_30] : memref<1x32xf32, #tpu.memory_space<vmem>>, vector<1x32xf32>
    %cst_31 = arith.constant dense<0.000000e+00> : vector<16xf32>
    %49 = vector.multi_reduction <add>, %46, %cst_31 [1] : vector<16x32xf32> to vector<16xf32>
    %50 = vector.shape_cast %49 : vector<16xf32> to vector<16x1xf32>
    %cst_32 = arith.constant 3.200000e+01 : f32
    %51 = vector.broadcast %cst_32 : f32 to vector<16x1xf32>
    %52 = arith.divf %50, %51 : vector<16x1xf32>
    %53 = arith.mulf %46, %46 : vector<16x32xf32>
    %cst_33 = arith.constant dense<0.000000e+00> : vector<16xf32>
    %54 = vector.multi_reduction <add>, %53, %cst_33 [1] : vector<16x32xf32> to vector<16xf32>
    %55 = vector.shape_cast %54 : vector<16xf32> to vector<16x1xf32>
    %cst_34 = arith.constant 3.200000e+01 : f32
    %56 = vector.broadcast %cst_34 : f32 to vector<16x1xf32>
    %57 = arith.divf %55, %56 : vector<16x1xf32>
    %58 = arith.mulf %52, %52 : vector<16x1xf32>
    %59 = arith.subf %57, %58 : vector<16x1xf32>
    %60 = vector.broadcast %52 : vector<16x1xf32> to vector<16x32xf32>
    %61 = arith.subf %46, %60 : vector<16x32xf32>
    %cst_35 = arith.constant 9.99999974E-6 : f32
    %62 = vector.broadcast %cst_35 : f32 to vector<16x1xf32>
    %63 = arith.addf %59, %62 : vector<16x1xf32>
    %64 = math.rsqrt %63 : vector<16x1xf32>
    %65 = vector.broadcast %64 : vector<16x1xf32> to vector<16x32xf32>
    %66 = arith.mulf %61, %65 : vector<16x32xf32>
    %67 = vector.broadcast %47 : vector<1x32xf32> to vector<16x32xf32>
    %68 = arith.mulf %66, %67 : vector<16x32xf32>
    %69 = vector.broadcast %48 : vector<1x32xf32> to vector<16x32xf32>
    %70 = arith.addf %68, %69 : vector<16x32xf32>
    %c0_36 = arith.constant 0 : index
    %c0_37 = arith.constant 0 : index
    %71 = vector.load %arg13[%c0_36, %c0_37] : memref<16x32xf32, #tpu.memory_space<vmem>>, vector<16x32xf32>
    tpu.vector_store %arg13[%c0_36, %c0_37], %70 {strides = array<i32>} : memref<16x32xf32, #tpu.memory_space<vmem>>, vector<16x32xf32>,
    return
  }
  func.func @transform_0(%arg0: i32) -> (i32, i32) {
    %c0_i32 = arith.constant 0 : i32
    %c0_i32_0 = arith.constant 0 : i32
    return %arg0, %c0_i32 : i32, i32
  }
  func.func @transform_1(%arg0: i32) -> (i32, i32) {
    %c0_i32 = arith.constant 0 : i32
    %c0_i32_0 = arith.constant 0 : i32
    return %arg0, %c0_i32 : i32, i32
  }
  func.func @transform_2(%arg0: i32) -> (i32, i32) {
    %c0_i32 = arith.constant 0 : i32
    %c0_i32_0 = arith.constant 0 : i32
    %c0_i32_1 = arith.constant 0 : i32
    return %c0_i32, %c0_i32_0 : i32, i32
  }
  func.func @transform_3(%arg0: i32) -> (i32, i32) {
    %c0_i32 = arith.constant 0 : i32
    %c0_i32_0 = arith.constant 0 : i32
    %c0_i32_1 = arith.constant 0 : i32
    return %c0_i32, %c0_i32_0 : i32, i32
  }
  func.func @transform_4(%arg0: i32) -> (i32, i32) {
    %c0_i32 = arith.constant 0 : i32
    %c0_i32_0 = arith.constant 0 : i32
    %c0_i32_1 = arith.constant 0 : i32
    return %c0_i32, %c0_i32_0 : i32, i32
  }
  func.func @transform_5(%arg0: i32) -> (i32, i32) {
    %c0_i32 = arith.constant 0 : i32
    %c0_i32_0 = arith.constant 0 : i32
    %c0_i32_1 = arith.constant 0 : i32
    return %c0_i32, %c0_i32_0 : i32, i32
  }
  func.func @transform_6(%arg0: i32) -> (i32, i32) {
    %c0_i32 = arith.constant 0 : i32
    %c0_i32_0 = arith.constant 0 : i32
    %c0_i32_1 = arith.constant 0 : i32
    return %c0_i32, %c0_i32_0 : i32, i32
  }
  func.func @transform_7(%arg0: i32) -> (i32, i32) {
    %c0_i32 = arith.constant 0 : i32
    %c0_i32_0 = arith.constant 0 : i32
    %c0_i32_1 = arith.constant 0 : i32
    return %c0_i32, %c0_i32_0 : i32, i32
  }
  func.func @transform_8(%arg0: i32) -> (i32, i32) {
    %c0_i32 = arith.constant 0 : i32
    %c0_i32_0 = arith.constant 0 : i32
    %c0_i32_1 = arith.constant 0 : i32
    return %c0_i32, %c0_i32_0 : i32, i32
  }
  func.func @transform_9(%arg0: i32) -> (i32, i32) {
    %c0_i32 = arith.constant 0 : i32
    %c0_i32_0 = arith.constant 0 : i32
    %c0_i32_1 = arith.constant 0 : i32
    return %c0_i32, %c0_i32_0 : i32, i32
  }
  func.func @transform_10(%arg0: i32) -> (i32, i32) {
    %c0_i32 = arith.constant 0 : i32
    %c0_i32_0 = arith.constant 0 : i32
    %c0_i32_1 = arith.constant 0 : i32
    return %c0_i32, %c0_i32_0 : i32, i32
  }
  func.func @transform_11(%arg0: i32) -> (i32, i32) {
    %c0_i32 = arith.constant 0 : i32
    %c0_i32_0 = arith.constant 0 : i32
    %c0_i32_1 = arith.constant 0 : i32
    return %c0_i32, %c0_i32_0 : i32, i32
  }
  func.func @transform_12(%arg0: i32) -> (i32, i32) {
    %c0_i32 = arith.constant 0 : i32
    %c0_i32_0 = arith.constant 0 : i32
    return %arg0, %c0_i32 : i32, i32
  }
}

</mosaic_0001>

<llo_original>
// kernel: encoder_forward.6
$region0: #{encoder_forward.6}
  #allocation0 [shape = 'u32[]', space=smem, size = 0x4, offset = 0x4, fixed_abs, tag = 'smem constant byte address 0x4 - core index']
  #allocation1 [shape = 'u32[72,128]{1,0:T(1,128)}', space=vmem, size = 0x9000, scoped, tag = 'internal scratch']
  %s0 = inlined_call_operand.vmem [shape: f32[16,32], index: 0, kind: input, shape index: {}]
  %s1 = inlined_call_operand.vmem [shape: bf16[32,96], index: 1, kind: input, shape index: {}]
  %s2 = inlined_call_operand.vmem [shape: f32[1,96], index: 2, kind: input, shape index: {}]
  %s3 = inlined_call_operand.vmem [shape: bf16[16,32], index: 3, kind: output, shape index: {0}]
  %s4 = inlined_call_operand.vmem [shape: bf16[16,32], index: 4, kind: output, shape index: {1}]
  %s5 = inlined_call_operand.vmem [shape: bf16[16,32], index: 5, kind: output, shape index: {2}]
  %6 = xla_tuple %s3, %s4, %s5
  %s7 = sld [smem:[#allocation0]]
  $region38: #{encoder_forward.6} parent=0
    _
  %s9 = ssub.s32 1, %s7
  %s10 = scalar_select 0, %s9, %s7
  // Predicated region
  $region2: #{encoder_forward.6} parent=0 // pred_check
    _
  $region3: #{encoder_forward.6} parent=0 // pred_check_branch
    %12 = sbr.rel (0) target = $region5
  $region4: #{encoder_forward.6} parent=0 // pred_region
    _
  $region5: #{encoder_forward.6} parent=0 // pred_fallthru
    _
  // Predicated region
  $region6: #{encoder_forward.6} parent=0 // pred_check
    _
  $region7: #{encoder_forward.6} parent=0 // pred_check_branch
    %14 = sbr.rel (0) target = $region9
  $region8: #{encoder_forward.6} parent=0 // pred_region
    _
  $region9: #{encoder_forward.6} parent=0 // pred_fallthru
    _
  // Predicated region
  $region10: #{encoder_forward.6} parent=0 // pred_check
    _
  $region11: #{encoder_forward.6} parent=0 // pred_check_branch
    %16 = sbr.rel (0) target = $region13
  $region12: #{encoder_forward.6} parent=0 // pred_region
    _
  $region13: #{encoder_forward.6} parent=0 // pred_fallthru
    _
  %v18 = vld [vmem:[%s0] sm:$0xff]
  %v19 = vld [vmem:[%s0 + $0x8] sm:$0xff]
  %v20 = vpack.c.bf16 %v19, %v18
  %v21 = vld [vmem:[%s1] sm:$0xf]
  %v22 = vld [vmem:[%s1 + $0x4] sm:$0xf]
  %v23 = vld [vmem:[%s1 + $0x8] sm:$0xf]
  %v24 = vld [vmem:[%s1 + $0xc] sm:$0xf]
  %v25 = vld [vmem:[%s2] sm:$0x1]
  %v27 = vperm.slane %v25, 0
  %v33 = vunpack.c.l.b16 %v21
  %v34 = vunpack.c.l.b16 %v22
  %v35 = vunpack.c.l.b16 %v23
  %v36 = vunpack.c.l.b16 %v24
  %v37 = vpack.c.b16 %v34, %v33
  %v38 = vpack.c.b16 %v36, %v35
  %vm41 = vcmask 261120
  %v43 = vsel %vm41, %v20, 0
  %45 = vmatpush.bf16.msra.mxu0 0
  %46 = vmatpush.bf16.msra.mxu0 0
  %47 = vmatpush.bf16.msra.mxu0 0
  %48 = vmatpush.bf16.msra.mxu0 0
  %49 = vmatpush.bf16.msra.mxu0 0
  %50 = vmatpush.bf16.msra.mxu0 0
  %51 = vmatpush.bf16.msra.mxu0 %v38
  %52 = vmatpush.bf16.msra.mxu0 %v37
  %53 = vmatmul.bf16.gmra.mxu0 %v43
  %v54 = vpop.f32.mrf.mxu0
  %v55 = vadd.f32 %v27, %v54
  %v56 = vpop.f32.mrf.mxu0
  %v57 = vadd.f32 %v27, %v56
  %58 = vdwg.mxu0
  %v59 = vpack.c.bf16 %v55, %v55
  %v60 = vpack.c.bf16 %v57, %v57
  %vm61 = vcmask 257024
  %62 = vst.msk [vmem:[%s3] sm:$0xf] %vm61, %v59
  %63 = vst.msk [vmem:[%s3 + $0x4] sm:$0xf] %vm61, %v60
  %66 = vrot.lane.b32.xlu0 %v59, 96
  %v67 = vpop.permute.xlu0 %66
  %68 = vrot.lane.b32.xlu0 %v60, 96
  %v69 = vpop.permute.xlu0 %68
  %72 = vst.msk [vmem:[%s4] sm:$0xf] %vm61, %v67
  %73 = vst.msk [vmem:[%s4 + $0x4] sm:$0xf] %vm61, %v69
  %74 = vrot.lane.b32.xlu0 %v59, 64
  %v75 = vpop.permute.xlu0 %74
  %76 = vrot.lane.b32.xlu0 %v60, 64
  %v77 = vpop.permute.xlu0 %76
  %80 = vst.msk [vmem:[%s5] sm:$0xf] %vm61, %v75
  %81 = vst.msk [vmem:[%s5 + $0x4] sm:$0xf] %vm61, %v77
  // Predicated region
  $region14: #{encoder_forward.6} parent=0 // pred_check
    _
  $region15: #{encoder_forward.6} parent=0 // pred_check_branch
    %83 = sbr.rel (0) target = $region17
  $region16: #{encoder_forward.6} parent=0 // pred_region
    _
  $region17: #{encoder_forward.6} parent=0 // pred_fallthru
    _
  // Predicated region
  $region18: #{encoder_forward.6} parent=0 // pred_check
    _
  $region19: #{encoder_forward.6} parent=0 // pred_check_branch
    %85 = sbr.rel (0) target = $region21
  $region20: #{encoder_forward.6} parent=0 // pred_region
    _
  $region21: #{encoder_forward.6} parent=0 // pred_fallthru
    _
  // Predicated region
  $region22: #{encoder_forward.6} parent=0 // pred_check
    _
  $region23: #{encoder_forward.6} parent=0 // pred_check_branch
    %87 = sbr.rel (0) target = $region25
  $region24: #{encoder_forward.6} parent=0 // pred_region
    _
  $region25: #{encoder_forward.6} parent=0 // pred_fallthru
    _
  // Predicated region
  $region26: #{encoder_forward.6} parent=0 // pred_check
    _
  $region27: #{encoder_forward.6} parent=0 // pred_check_branch
    %89 = sbr.rel (0) target = $region29
  $region28: #{encoder_forward.6} parent=0 // pred_region
    _
  $region29: #{encoder_forward.6} parent=0 // pred_fallthru
    _
  // Predicated region
  $region30: #{encoder_forward.6} parent=0 // pred_check
    _
  $region31: #{encoder_forward.6} parent=0 // pred_check_branch
    %91 = sbr.rel (0) target = $region33
  $region32: #{encoder_forward.6} parent=0 // pred_region
    _
  $region33: #{encoder_forward.6} parent=0 // pred_fallthru
    _
  // Predicated region
  $region34: #{encoder_forward.6} parent=0 // pred_check
    _
  $region35: #{encoder_forward.6} parent=0 // pred_check_branch
    %93 = sbr.rel (0) target = $region37
  $region36: #{encoder_forward.6} parent=0 // pred_region
    _
  $region37: #{encoder_forward.6} parent=0 // pred_fallthru
    _

// kernel: encoder_forward.7
$region0: #{encoder_forward.7}
  #allocation0 [shape = 'u32[]', space=smem, size = 0x4, offset = 0x4, fixed_abs, tag = 'smem constant byte address 0x4 - core index']
  #allocation1 [shape = 'u32[72,128]{1,0:T(1,128)}', space=vmem, size = 0x9000, scoped, tag = 'internal scratch']
  %s0 = inlined_call_operand.vmem [shape: bf16[8,8,8], index: 0, kind: input, shape index: {}]
  %s1 = inlined_call_operand.vmem [shape: bf16[8,8,8], index: 1, kind: input, shape index: {}]
  %s2 = inlined_call_operand.vmem [shape: bf16[8,8,8], index: 2, kind: input, shape index: {}]
  %s3 = inlined_call_operand.vmem [shape: f32[8,1,8], index: 3, kind: input, shape index: {}]
  %s4 = inlined_call_operand.vmem [shape: bf16[8,8,8], index: 4, kind: output, shape index: {0}]
  %s5 = inlined_call_operand.hbm [shape: f32[8,8,8], index: 5, kind: output, shape index: {1}]
  %6 = xla_tuple %s4, %s5
  %s7 = sld [smem:[#allocation0]]
  $region57: #{encoder_forward.7} parent=0
    _
  %s9 = ssub.s32 1, %s7
  %s10 = scalar_select 0, %s9, %s7
  $region1: #{encoder_forward.7} parent=0
    #allocation2 [shape = 'u8[8192]{0}', space=vmem, size = 0x2000, scoped, tag = 'output window, operand 1']
    #allocation3 [shape = 's32[2]{0}', space=sflag, size = 0x8, scoped, tag = 'scoped memory for encoder_forward.7']
    %11 = vsyncpa [#allocation3], 0
    %s12 = scalar_lea.sflag [#allocation3], 1
    %13 = vsyncpa %s12, 0
    loop: start=0, step=1, limit=10
    $region2: #{encoder_forward.7} parent=1 // loop_pre_header
      _
    $region3: #{encoder_forward.7} parent=1 // loop_header
      %s15 = sphi 0, %s19
      %p16 = scmp.ge.s32.totalorder %s15, 10
      %s25 = sphi 0, %s27
      %s28 = sphi 0, %s25
      %s29 = sphi 0, %s28
      %s45 = sphi 0, %s29
      %s51 = sphi 0, %s53
      %s54 = sphi 0, %s51
      %s55 = sphi 0, %s54
      %s71 = sphi 0, %s55
      %s77 = sphi 0, %s79
      %s80 = sphi 0, %s77
      %s81 = sphi 0, %s80
      %s97 = sphi 0, %s81
      %s103 = sphi 0, %s105
      %s106 = sphi 0, %s103
      %s107 = sphi 0, %s106
      %s123 = sphi 0, %s107
      %s129 = sphi 0, %s131
      %s132 = sphi 0, %s129
      %s133 = sphi 0, %s132
      %s149 = sphi 0, %s133
      %s155 = sphi 0, %s157
      %s158 = sphi 0, %s155
      %s159 = sphi 0, %s158
      %s175 = sphi 0, %s159
    $region4: #{encoder_forward.7} parent=1 // loop_header_branch
      %18 = sbr.rel (%p16) target = $region8
    $region5: #{encoder_forward.7} parent=1 // loop_body
      %s20 = ssub.s32 %s15, 1
      %s21 = ssub.s32 %s15, 2
      %s22 = sadd.s32 %s15, 1
      %s23 = ssub.s32 %s15, %s22
      %p24 = scmp.eq.s32.totalorder %s23, 0
      %s26 = sadd.s32 %s25, 1
      %s27 = scalar_select %p24, %s25, %s26
      %p30 = pneg %p24
      %p31 = scmp.eq.s32.totalorder %s15, 7
      %p32 = por %p30, %p31
      %p33 = scmp.ne.s32.totalorder %s25, %s28
      %p34 = scmp.eq.s32.totalorder %s15, 0
      %p35 = por %p33, %p34
      %p36 = scmp.ne.s32.totalorder %s25, %s28
      %p37 = scmp.eq.s32.totalorder %s20, 7
      %p38 = por %p36, %p37
      %p39 = scmp.ne.s32.totalorder %s28, %s29
      %p40 = scmp.eq.s32.totalorder %s20, 0
      %p41 = por %p39, %p40
      %p42 = scmp.ne.s32.totalorder %s28, %s29
      %p43 = scmp.eq.s32.totalorder %s21, 7
      %p44 = por %p42, %p43
      %p46 = scmp.ne.s32.totalorder %s29, %s45
      %p47 = scmp.eq.s32.totalorder %s21, 0
      %p48 = por %p46, %p47
      %s49 = ssub.s32 %s15, %s22
      %p50 = scmp.eq.s32.totalorder %s49, 0
      %s52 = sadd.s32 %s51, 1
      %s53 = scalar_select %p50, %s51, %s52
      %p56 = pneg %p50
      %p57 = scmp.eq.s32.totalorder %s15, 7
      %p58 = por %p56, %p57
      %p59 = scmp.ne.s32.totalorder %s51, %s54
      %p60 = scmp.eq.s32.totalorder %s15, 0
      %p61 = por %p59, %p60
      %p62 = scmp.ne.s32.totalorder %s51, %s54
      %p63 = scmp.eq.s32.totalorder %s20, 7
      %p64 = por %p62, %p63
      %p65 = scmp.ne.s32.totalorder %s54, %s55
      %p66 = scmp.eq.s32.totalorder %s20, 0
      %p67 = por %p65, %p66
      %p68 = scmp.ne.s32.totalorder %s54, %s55
      %p69 = scmp.eq.s32.totalorder %s21, 7
      %p70 = por %p68, %p69
      %p72 = scmp.ne.s32.totalorder %s55, %s71
      %p73 = scmp.eq.s32.totalorder %s21, 0
      %p74 = por %p72, %p73
      %s75 = ssub.s32 %s15, %s22
      %p76 = scmp.eq.s32.totalorder %s75, 0
      %s78 = sadd.s32 %s77, 1
      %s79 = scalar_select %p76, %s77, %s78
      %p82 = pneg %p76
      %p83 = scmp.eq.s32.totalorder %s15, 7
      %p84 = por %p82, %p83
      %p85 = scmp.ne.s32.totalorder %s77, %s80
      %p86 = scmp.eq.s32.totalorder %s15, 0
      %p87 = por %p85, %p86
      %p88 = scmp.ne.s32.totalorder %s77, %s80
      %p89 = scmp.eq.s32.totalorder %s20, 7
      %p90 = por %p88, %p89
      %p91 = scmp.ne.s32.totalorder %s80, %s81
      %p92 = scmp.eq.s32.totalorder %s20, 0
      %p93 = por %p91, %p92
      %p94 = scmp.ne.s32.totalorder %s80, %s81
      %p95 = scmp.eq.s32.totalorder %s21, 7
      %p96 = por %p94, %p95
      %p98 = scmp.ne.s32.totalorder %s81, %s97
      %p99 = scmp.eq.s32.totalorder %s21, 0
      %p100 = por %p98, %p99
      %s101 = ssub.s32 %s15, %s22
      %p102 = scmp.eq.s32.totalorder %s101, 0
      %s104 = sadd.s32 %s103, 1
      %s105 = scalar_select %p102, %s103, %s104
      %p108 = pneg %p102
      %p109 = scmp.eq.s32.totalorder %s15, 7
      %p110 = por %p108, %p109
      %p111 = scmp.ne.s32.totalorder %s103, %s106
      %p112 = scmp.eq.s32.totalorder %s15, 0
      %p113 = por %p111, %p112
      %p114 = scmp.ne.s32.totalorder %s103, %s106
      %p115 = scmp.eq.s32.totalorder %s20, 7
      %p116 = por %p114, %p115
      %p117 = scmp.ne.s32.totalorder %s106, %s107
      %p118 = scmp.eq.s32.totalorder %s20, 0
      %p119 = por %p117, %p118
      %p120 = scmp.ne.s32.totalorder %s106, %s107
      %p121 = scmp.eq.s32.totalorder %s21, 7
      %p122 = por %p120, %p121
      %p124 = scmp.ne.s32.totalorder %s107, %s123
      %p125 = scmp.eq.s32.totalorder %s21, 0
      %p126 = por %p124, %p125
      %s127 = ssub.s32 %s15, %s22
      %p128 = scmp.eq.s32.totalorder %s127, 0
      %s130 = sadd.s32 %s129, 1
      %s131 = scalar_select %p128, %s129, %s130
      %p134 = pneg %p128
      %p135 = scmp.eq.s32.totalorder %s15, 7
      %p136 = por %p134, %p135
      %p137 = scmp.ne.s32.totalorder %s129, %s132
      %p138 = scmp.eq.s32.totalorder %s15, 0
      %p139 = por %p137, %p138
      %p140 = scmp.ne.s32.totalorder %s129, %s132
      %p141 = scmp.eq.s32.totalorder %s20, 7
      %p142 = por %p140, %p141
      %p143 = scmp.ne.s32.totalorder %s132, %s133
      %p144 = scmp.eq.s32.totalorder %s20, 0
      %p145 = por %p143, %p144
      %p146 = scmp.ne.s32.totalorder %s132, %s133
      %p147 = scmp.eq.s32.totalorder %s21, 7
      %p148 = por %p146, %p147
      %p150 = scmp.ne.s32.totalorder %s133, %s149
      %p151 = scmp.eq.s32.totalorder %s21, 0
      %p152 = por %p150, %p151
      %s153 = ssub.s32 %s15, %s22
      %p154 = scmp.eq.s32.totalorder %s153, 0
      %s156 = sadd.s32 %s155, 1
      %s157 = scalar_select %p154, %s155, %s156
      %p160 = pneg %p154
      %p161 = scmp.eq.s32.totalorder %s15, 7
      %p162 = por %p160, %p161
      %p163 = scmp.ne.s32.totalorder %s155, %s158
      %p164 = scmp.eq.s32.totalorder %s15, 0
      %p165 = por %p163, %p164
      %p166 = scmp.ne.s32.totalorder %s155, %s158
      %p167 = scmp.eq.s32.totalorder %s20, 7
      %p168 = por %p166, %p167
      %p169 = scmp.ne.s32.totalorder %s158, %s159
      %p170 = scmp.eq.s32.totalorder %s20, 0
      %p171 = por %p169, %p170
      %p172 = scmp.ne.s32.totalorder %s158, %s159
      %p173 = scmp.eq.s32.totalorder %s21, 7
      %p174 = por %p172, %p173
      %p176 = scmp.ne.s32.totalorder %s159, %s175
      %p177 = scmp.eq.s32.totalorder %s21, 0
      %p178 = por %p176, %p177
      %p179 = scmp.le.s32.totalorder 1, %s15
      %p180 = scmp.lt.s32.totalorder %s15, 9
      %p181 = pnand %p179, %p180
      %p182 = pneg %p181
      // Predicated region
      $region9: #{encoder_forward.7} parent=5 // pred_check
        _
      $region10: #{encoder_forward.7} parent=5 // pred_check_branch
        %184 = sbr.rel (%p181) target = $region12
      $region11: #{encoder_forward.7} parent=5 // pred_region
        %s185 = ssub.s32 %s15, 1
      $region12: #{encoder_forward.7} parent=5 // pred_fallthru
        _
      %p186 = scmp.lt.s32.totalorder %s15, 8
      // Predicated region
      $region13: #{encoder_forward.7} parent=5 // pred_check
        %p187 = pneg %p186
      $region14: #{encoder_forward.7} parent=5 // pred_check_branch
        %189 = sbr.rel (%p187) target = $region16
      $region15: #{encoder_forward.7} parent=5 // pred_region
        // Predicated region
        $region17: #{encoder_forward.7} parent=15 // pred_check
          %p190 = pneg %p35
        $region18: #{encoder_forward.7} parent=15 // pred_check_branch
          %192 = sbr.rel (%p190) target = $region20
        $region19: #{encoder_forward.7} parent=15 // pred_region
          %p193 = scmp.lt.s32.totalorder %s15, 7
          %s194 = scalar_select %p193, %s15, 7
          %s195 = smul.addr %s194, 4
          %s196 = scalar_lea.vmem %s0, %s195
        $region20: #{encoder_forward.7} parent=15 // pred_fallthru
          _
        // Predicated region
        $region21: #{encoder_forward.7} parent=15 // pred_check
          %p197 = pneg %p61
        $region22: #{encoder_forward.7} parent=15 // pred_check_branch
          %199 = sbr.rel (%p197) target = $region24
        $region23: #{encoder_forward.7} parent=15 // pred_region
          %p200 = scmp.lt.s32.totalorder %s15, 7
          %s201 = scalar_select %p200, %s15, 7
          %s202 = smul.addr %s201, 4
          %s203 = scalar_lea.vmem %s1, %s202
        $region24: #{encoder_forward.7} parent=15 // pred_fallthru
          _
        // Predicated region
        $region25: #{encoder_forward.7} parent=15 // pred_check
          %p204 = pneg %p87
        $region26: #{encoder_forward.7} parent=15 // pred_check_branch
          %206 = sbr.rel (%p204) target = $region28
        $region27: #{encoder_forward.7} parent=15 // pred_region
          %p207 = scmp.lt.s32.totalorder %s15, 7
          %s208 = scalar_select %p207, %s15, 7
          %s209 = smul.addr %s208, 4
          %s210 = scalar_lea.vmem %s2, %s209
        $region28: #{encoder_forward.7} parent=15 // pred_fallthru
          _
        // Predicated region
        $region29: #{encoder_forward.7} parent=15 // pred_check
          %p211 = pneg %p113
        $region30: #{encoder_forward.7} parent=15 // pred_check_branch
          %213 = sbr.rel (%p211) target = $region32
        $region31: #{encoder_forward.7} parent=15 // pred_region
          %p214 = scmp.lt.s32.totalorder %s15, 7
          %s215 = scalar_select %p214, %s15, 7
          %s216 = scalar_lea.vmem %s3, %s215
        $region32: #{encoder_forward.7} parent=15 // pred_fallthru
          _
      $region16: #{encoder_forward.7} parent=5 // pred_fallthru
        _
      %p217 = scmp.le.s32.totalorder 1, %s15
      %p218 = scmp.lt.s32.totalorder %s15, 9
      %p219 = pnand %p217, %p218
      %p220 = pneg %p219
      // Predicated region
      $region33: #{encoder_forward.7} parent=5 // pred_check
        _
      $region34: #{encoder_forward.7} parent=5 // pred_check_branch
        %222 = sbr.rel (%p219) target = $region36
      $region35: #{encoder_forward.7} parent=5 // pred_region
        %s223 = ssub.s32 %s15, 1
        %p224 = scmp.lt.s32.totalorder %s20, 7
        %s225 = scalar_select %p224, %s20, 7
        %s226 = smul.addr %s225, 4
        %s227 = scalar_lea.vmem %s0, %s226
        %p228 = pneg %p41
        %p229 = pneg %p38
        %p230 = scmp.lt.s32.totalorder %s20, 7
        %s231 = scalar_select %p230, %s20, 7
        %s232 = smul.addr %s231, 4
        %s233 = scalar_lea.vmem %s1, %s232
        %p234 = pneg %p67
        %p235 = pneg %p64
        %p236 = scmp.lt.s32.totalorder %s20, 7
        %s237 = scalar_select %p236, %s20, 7
        %s238 = smul.addr %s237, 4
        %s239 = scalar_lea.vmem %s2, %s238
        %p240 = pneg %p93
        %p241 = pneg %p90
        %p242 = scmp.lt.s32.totalorder %s20, 7
        %s243 = scalar_select %p242, %s20, 7
        %s244 = scalar_lea.vmem %s3, %s243
        %p245 = pneg %p119
        %p246 = pneg %p116
        %p247 = pneg %p145
        %p248 = pneg %p142
        %p249 = scmp.lt.s32.totalorder %s20, 7
        %s250 = scalar_select %p249, %s20, 7
        %s251 = smul.addr %s250, 4
        %s252 = scalar_lea.vmem %s4, %s251
        %p253 = pneg %p171
        %p254 = pneg %p168
        %s255 = sand.u32 %s158, 1
        %s256 = scalar_lea.sflag [#allocation3], %s255
        %s257 = sand.u32 %s158, 1
        %s258 = smul.addr %s257, 8
        %s259 = scalar_lea.vmem [#allocation2], %s258
        %p260 = scmp.lt.s32.totalorder %s20, 7
        %s261 = scalar_select %p260, %s20, 7
        %s262 = smul.addr %s261, 4
        %s263 = scalar_lea.vmem %s0, %s262
        %p264 = scmp.lt.s32.totalorder %s20, 7
        %s265 = scalar_select %p264, %s20, 7
        %s266 = smul.addr %s265, 4
        %s267 = scalar_lea.vmem %s1, %s266
        %p268 = scmp.lt.s32.totalorder %s20, 7
        %s269 = scalar_select %p268, %s20, 7
        %s270 = smul.addr %s269, 4
        %s271 = scalar_lea.vmem %s2, %s270
        %p272 = scmp.lt.s32.totalorder %s20, 7
        %s273 = scalar_select %p272, %s20, 7
        %s274 = scalar_lea.vmem %s3, %s273
        %p275 = scmp.lt.s32.totalorder %s20, 7
        %s276 = scalar_select %p275, %s20, 7
        %s277 = smul.addr %s276, 4
        %s278 = scalar_lea.vmem %s4, %s277
        %v280 = vld [vmem:[%s263] sm:$0xf]
        %v281 = vld [vmem:[%s267] sm:$0xf]
        %v282 = vld [vmem:[%s271] sm:$0xf]
        %v283 = vld [vmem:[%s274] sm:$0x1]
        %v285 = vperm.slane %v283, 0
        %vm287 = vcmask 64512
        %v289 = vsel %vm287, %v280, 0
        %v292 = vsel %vm287, %v281, 0
        %294 = vmatpush.bf16.xpose.msra.mxu0 0
        %295 = vmatpush.bf16.xpose.msra.mxu0 0
        %296 = vmatpush.bf16.xpose.msra.mxu0 0
        %297 = vmatpush.bf16.xpose.msra.mxu0 0
        %298 = vmatpush.bf16.xpose.msra.mxu0 0
        %299 = vmatpush.bf16.xpose.msra.mxu0 0
        %300 = vmatpush.bf16.xpose.msra.mxu0 0
        %301 = vmatpush.bf16.xpose.msra.mxu0 %v292
        %302 = vmatmul.bf16.gmra.mxu0 %v289
        %v303 = vpop.f32.mrf.mxu0
        %v304 = vadd.f32 %v285, %v303
        %v305 = vpop.f32.mrf.mxu0
        %306 = vdwg.mxu0
        %v307 = vsel %vm287, %v304, -inf
        %308 = vmax.xlane.f32.xlu0 %v307
        %v309 = vpop.xlane.xlu0 %308
        %v310 = vsub.f32 %v304, %v309
        %v311 = vmul.f32 %v310, 1.442695
        %v312 = vpow.pop %v311
        %v313 = vsel %vm287, %v312, 0.0
        %314 = vadd.xlane.f32.xlu0 %v313
        %v315 = vpop.xlane.xlu0 %314
        %v316 = vrcp.pop %v315
        %v317 = vmul.f32 %v312, %v316
        %318 = vst.msk [vmem:[%s259] sm:$0xff] %vm287, %v317
        %v319 = vpack.c.bf16 %v317, %v317
        %v321 = vsel %vm287, %v319, 0
        %vm323 = vcmask 1043456
        %v325 = vsel %vm323, %v282, 0
        %327 = vmatpush.bf16.msra.mxu0 0
        %328 = vmatpush.bf16.msra.mxu0 0
        %329 = vmatpush.bf16.msra.mxu0 0
        %330 = vmatpush.bf16.msra.mxu0 0
        %331 = vmatpush.bf16.msra.mxu0 0
        %332 = vmatpush.bf16.msra.mxu0 0
        %333 = vmatpush.bf16.msra.mxu0 0
        %334 = vmatpush.bf16.msra.mxu0 %v325
        %335 = vmatmul.bf16.gmra.mxu0 %v321
        %v336 = vpop.f32.mrf.mxu0
        %v337 = vadd.f32 0.0, %v336
        %v338 = vpop.f32.mrf.mxu0
        %339 = vdwg.mxu0
        %v340 = vpack.c.bf16 %v337, %v337
        %vm341 = vcmask 60416
        %342 = vst.msk [vmem:[%s278] sm:$0xf] %vm341, %v340
        %p343 = scmp.lt.s32.totalorder %s20, 7
        %s344 = scalar_select %p343, %s20, 7
        %s345 = smul.addr %s344, 4
        %s346 = scalar_lea.vmem %s4, %s345
        %s347 = sand.u32 %s158, 1
        %s348 = scalar_lea.sflag [#allocation3], %s347
        %s349 = sand.u32 %s158, 1
        %s350 = smul.addr %s349, 8
        %s351 = scalar_lea.vmem [#allocation2], %s350
        // Predicated region
        $region37: #{encoder_forward.7} parent=35 // pred_check
          %p352 = pneg %p142
        $region38: #{encoder_forward.7} parent=35 // pred_check_branch
          %354 = sbr.rel (%p352) target = $region40
        $region39: #{encoder_forward.7} parent=35 // pred_region
          _
        $region40: #{encoder_forward.7} parent=35 // pred_fallthru
          _
        // Predicated region
        $region41: #{encoder_forward.7} parent=35 // pred_check
          %p355 = pneg %p168
        $region42: #{encoder_forward.7} parent=35 // pred_check_branch
          %357 = sbr.rel (%p355) target = $region44
        $region43: #{encoder_forward.7} parent=35 // pred_region
          %359 = vsyncadd %s348, 0
          %s360 = smul.addr %s20, 8
          %s361 = scalar_lea.hbm %s5, %s360
          %s363 = sshll.u32 %s351, 4
          %s364 = int_to_ptr.vmem [resolvable:$true] %s363
          %s365 = sshll.u32 %s361, 4
          %s366 = int_to_ptr.hbm [resolvable:$true] %s365
          %368 = dma.vmem_to_hbm [thread:$0]  %s364, 128, %s366, %s348
        $region44: #{encoder_forward.7} parent=35 // pred_fallthru
          _
      $region36: #{encoder_forward.7} parent=5 // pred_fallthru
        _
      %p369 = scmp.le.s32.totalorder 2, %s15
      // Predicated region
      $region45: #{encoder_forward.7} parent=5 // pred_check
        %p370 = pneg %p369
      $region46: #{encoder_forward.7} parent=5 // pred_check_branch
        %372 = sbr.rel (%p370) target = $region48
      $region47: #{encoder_forward.7} parent=5 // pred_region
        %s373 = ssub.s32 %s15, 2
        // Predicated region
        $region49: #{encoder_forward.7} parent=47 // pred_check
          %p374 = pneg %p148
        $region50: #{encoder_forward.7} parent=47 // pred_check_branch
          %376 = sbr.rel (%p374) target = $region52
        $region51: #{encoder_forward.7} parent=47 // pred_region
          %p377 = scmp.lt.s32.totalorder %s21, 7
          %s378 = scalar_select %p377, %s21, 7
          %s379 = smul.addr %s378, 4
          %s380 = scalar_lea.vmem %s4, %s379
        $region52: #{encoder_forward.7} parent=47 // pred_fallthru
          _
        // Predicated region
        $region53: #{encoder_forward.7} parent=47 // pred_check
          %p381 = pneg %p174
        $region54: #{encoder_forward.7} parent=47 // pred_check_branch
          %383 = sbr.rel (%p381) target = $region56
        $region55: #{encoder_forward.7} parent=47 // pred_region
          %s384 = sand.u32 %s159, 1
          %s385 = scalar_lea.sflag [#allocation3], %s384
          %s386 = sand.u32 %s159, 1
          %s387 = smul.addr %s386, 8
          %s388 = scalar_lea.vmem [#allocation2], %s387
          %390 = dma.done %s385, 128
        $region56: #{encoder_forward.7} parent=47 // pred_fallthru
          _
      $region48: #{encoder_forward.7} parent=5 // pred_fallthru
        _
    $region6: #{encoder_forward.7} parent=1 // loop_footer
      %s19 = sadd.s32 1, %s15
    $region7: #{encoder_forward.7} parent=1 // loop_footer_branch
      %14 = sbr.rel target = $region3
    $region8: #{encoder_forward.7} parent=1 // loop_exit
      _
    %391 = vsyncpa [#allocation3], 1
    %s392 = scalar_lea.sflag [#allocation3], 1
    %393 = vsyncpa %s392, 1

// kernel: encoder_forward.8
$region0: #{encoder_forward.8}
  #allocation0 [shape = 'u32[]', space=smem, size = 0x4, offset = 0x4, fixed_abs, tag = 'smem constant byte address 0x4 - core index']
  #allocation1 [shape = 'u32[72,128]{1,0:T(1,128)}', space=vmem, size = 0x9000, scoped, tag = 'internal scratch']
  %s0 = inlined_call_operand.vmem [shape: bf16[16,32], index: 0, kind: input, shape index: {}]
  %s1 = inlined_call_operand.vmem [shape: f32[16,32], index: 1, kind: input, shape index: {}]
  %s2 = inlined_call_operand.vmem [shape: bf16[32,32], index: 2, kind: input, shape index: {}]
  %s3 = inlined_call_operand.vmem [shape: f32[1,32], index: 3, kind: input, shape index: {}]
  %s4 = inlined_call_operand.vmem [shape: f32[1,32], index: 4, kind: input, shape index: {}]
  %s5 = inlined_call_operand.vmem [shape: f32[1,32], index: 5, kind: input, shape index: {}]
  %s6 = inlined_call_operand.vmem [shape: bf16[32,64], index: 6, kind: input, shape index: {}]
  %s7 = inlined_call_operand.vmem [shape: f32[1,64], index: 7, kind: input, shape index: {}]
  %s8 = inlined_call_operand.vmem [shape: bf16[64,32], index: 8, kind: input, shape index: {}]
  %s9 = inlined_call_operand.vmem [shape: f32[1,32], index: 9, kind: input, shape index: {}]
  %s10 = inlined_call_operand.vmem [shape: f32[1,32], index: 10, kind: input, shape index: {}]
  %s11 = inlined_call_operand.vmem [shape: f32[1,32], index: 11, kind: input, shape index: {}]
  %s12 = inlined_call_operand.vmem [shape: f32[16,32], index: 12, kind: output, shape index: {}]
  %s13 = sld [smem:[#allocation0]]
  $region58: #{encoder_forward.8} parent=0
    _
  %s15 = ssub.s32 1, %s13
  %s16 = scalar_select 0, %s15, %s13
  // Predicated region
  $region2: #{encoder_forward.8} parent=0 // pred_check
    _
  $region3: #{encoder_forward.8} parent=0 // pred_check_branch
    %18 = sbr.rel (0) target = $region5
  $region4: #{encoder_forward.8} parent=0 // pred_region
    _
  $region5: #{encoder_forward.8} parent=0 // pred_fallthru
    _
  // Predicated region
  $region6: #{encoder_forward.8} parent=0 // pred_check
    _
  $region7: #{encoder_forward.8} parent=0 // pred_check_branch
    %20 = sbr.rel (0) target = $region9
  $region8: #{encoder_forward.8} parent=0 // pred_region
    _
  $region9: #{encoder_forward.8} parent=0 // pred_fallthru
    _
  // Predicated region
  $region10: #{encoder_forward.8} parent=0 // pred_check
    _
  $region11: #{encoder_forward.8} parent=0 // pred_check_branch
    %22 = sbr.rel (0) target = $region13
  $region12: #{encoder_forward.8} parent=0 // pred_region
    _
  $region13: #{encoder_forward.8} parent=0 // pred_fallthru
    _
  // Predicated region
  $region14: #{encoder_forward.8} parent=0 // pred_check
    _
  $region15: #{encoder_forward.8} parent=0 // pred_check_branch
    %24 = sbr.rel (0) target = $region17
  $region16: #{encoder_forward.8} parent=0 // pred_region
    _
  $region17: #{encoder_forward.8} parent=0 // pred_fallthru
    _
  // Predicated region
  $region18: #{encoder_forward.8} parent=0 // pred_check
    _
  $region19: #{encoder_forward.8} parent=0 // pred_check_branch
    %26 = sbr.rel (0) target = $region21
  $region20: #{encoder_forward.8} parent=0 // pred_region
    _
  $region21: #{encoder_forward.8} parent=0 // pred_fallthru
    _
  // Predicated region
  $region22: #{encoder_forward.8} parent=0 // pred_check
    _
  $region23: #{encoder_forward.8} parent=0 // pred_check_branch
    %28 = sbr.rel (0) target = $region25
  $region24: #{encoder_forward.8} parent=0 // pred_region
    _
  $region25: #{encoder_forward.8} parent=0 // pred_fallthru
    _
  // Predicated region
  $region26: #{encoder_forward.8} parent=0 // pred_check
    _
  $region27: #{encoder_forward.8} parent=0 // pred_check_branch
    %30 = sbr.rel (0) target = $region29
  $region28: #{encoder_forward.8} parent=0 // pred_region
    _
  $region29: #{encoder_forward.8} parent=0 // pred_fallthru
    _
  // Predicated region
  $region30: #{encoder_forward.8} parent=0 // pred_check
    _
  $region31: #{encoder_forward.8} parent=0 // pred_check_branch
    %32 = sbr.rel (0) target = $region33
  $region32: #{encoder_forward.8} parent=0 // pred_region
    _
  $region33: #{encoder_forward.8} parent=0 // pred_fallthru
    _
  // Predicated region
  $region34: #{encoder_forward.8} parent=0 // pred_check
    _
  $region35: #{encoder_forward.8} parent=0 // pred_check_branch
    %34 = sbr.rel (0) target = $region37
  $region36: #{encoder_forward.8} parent=0 // pred_region
    _
  $region37: #{encoder_forward.8} parent=0 // pred_fallthru
    _
  // Predicated region
  $region38: #{encoder_forward.8} parent=0 // pred_check
    _
  $region39: #{encoder_forward.8} parent=0 // pred_check_branch
    %36 = sbr.rel (0) target = $region41
  $region40: #{encoder_forward.8} parent=0 // pred_region
    _
  $region41: #{encoder_forward.8} parent=0 // pred_fallthru
    _
  // Predicated region
  $region42: #{encoder_forward.8} parent=0 // pred_check
    _
  $region43: #{encoder_forward.8} parent=0 // pred_check_branch
    %38 = sbr.rel (0) target = $region45
  $region44: #{encoder_forward.8} parent=0 // pred_region
    _
  $region45: #{encoder_forward.8} parent=0 // pred_fallthru
    _
  // Predicated region
  $region46: #{encoder_forward.8} parent=0 // pred_check
    _
  $region47: #{encoder_forward.8} parent=0 // pred_check_branch
    %40 = sbr.rel (0) target = $region49
  $region48: #{encoder_forward.8} parent=0 // pred_region
    _
  $region49: #{encoder_forward.8} parent=0 // pred_fallthru
    _
  %v42 = vld [vmem:[%s0] sm:$0xf]
  %v43 = vld [vmem:[%s0 + $0x4] sm:$0xf]
  %v44 = vld [vmem:[%s2] sm:$0xf]
  %v45 = vld [vmem:[%s2 + $0x4] sm:$0xf]
  %v46 = vld [vmem:[%s2 + $0x8] sm:$0xf]
  %v47 = vld [vmem:[%s2 + $0xc] sm:$0xf]
  %v48 = vld [vmem:[%s3] sm:$0x1]
  %v50 = vperm.slane %v48, 0
  %v54 = vunpack.c.l.b16 %v42
  %v55 = vunpack.c.l.b16 %v43
  %v56 = vpack.c.b16 %v55, %v54
  %v61 = vunpack.c.l.b16 %v44
  %v62 = vunpack.c.l.b16 %v45
  %v63 = vunpack.c.l.b16 %v46
  %v64 = vunpack.c.l.b16 %v47
  %v65 = vpack.c.b16 %v62, %v61
  %v66 = vpack.c.b16 %v64, %v63
  %vm69 = vcmask 261120
  %v71 = vsel %vm69, %v56, 0
  %73 = vmatpush.bf16.msra.mxu0 0
  %74 = vmatpush.bf16.msra.mxu0 0
  %75 = vmatpush.bf16.msra.mxu0 0
  %76 = vmatpush.bf16.msra.mxu0 0
  %77 = vmatpush.bf16.msra.mxu0 0
  %78 = vmatpush.bf16.msra.mxu0 0
  %79 = vmatpush.bf16.msra.mxu0 %v66
  %80 = vmatpush.bf16.msra.mxu0 %v65
  %81 = vmatmul.bf16.gmra.mxu0 %v71
  %v82 = vpop.f32.mrf.mxu0
  %v83 = vadd.f32 %v50, %v82
  %v84 = vpop.f32.mrf.mxu0
  %v85 = vadd.f32 %v50, %v84
  %86 = vdwg.mxu0
  %v87 = vld [vmem:[%s1] sm:$0xff]
  %v88 = vld [vmem:[%s1 + $0x8] sm:$0xff]
  %v89 = vadd.f32 %v83, %v87
  %v90 = vadd.f32 %v85, %v88
  %v91 = vld [vmem:[%s4] sm:$0x1]
  %v92 = vld [vmem:[%s5] sm:$0x1]
  %v93 = vsel %vm69, %v89, 0.0
  %94 = vadd.xlane.f32.xlu0 %v93
  %v95 = vpop.xlane.xlu0 %94
  %v96 = vsel %vm69, %v90, 0.0
  %97 = vadd.xlane.f32.xlu0 %v96
  %v98 = vpop.xlane.xlu0 %97
  %v99 = vrcp.pop 32.0
  %v100 = vmul.f32 32.0, %v99
  %v101 = vsub.f32 1.0, %v100
  %v102 = vmul.f32 %v99, %v101
  %v103 = vadd.f32 %v99, %v102
  %vm104 = vweird.f32 %v99
  %v105 = vsel %vm104, %v99, %v103
  %v106 = vmul.f32 %v95, %v105
  %v107 = vmul.f32 %v98, %v105
  %v108 = vmul.f32 %v89, %v89
  %v109 = vmul.f32 %v90, %v90
  %v110 = vsel %vm69, %v108, 0.0
  %111 = vadd.xlane.f32.xlu0 %v110
  %v112 = vpop.xlane.xlu0 %111
  %v113 = vsel %vm69, %v109, 0.0
  %114 = vadd.xlane.f32.xlu0 %v113
  %v115 = vpop.xlane.xlu0 %114
  %v116 = vmul.f32 %v112, %v105
  %v117 = vmul.f32 %v115, %v105
  %v118 = vmul.f32 %v106, %v106
  %v119 = vmul.f32 %v107, %v107
  %v120 = vsub.f32 %v116, %v118
  %v121 = vsub.f32 %v117, %v119
  %v122 = vsub.f32 %v89, %v106
  %v123 = vsub.f32 %v90, %v107
  %v124 = vadd.f32 %v120, 1e-05
  %v125 = vadd.f32 %v121, 1e-05
  %v126 = vrsqrt.pop %v124
  %v127 = vmul.f32 %v126, %v124
  %v128 = vmul.f32 %v127, %v126
  %v129 = vmul.f32 0.5, %v128
  %v130 = vsub.f32 1.5, %v129
  %v131 = vmul.f32 %v126, %v130
  %vm132 = vweird.f32 %v124
  %vm133 = vweird.f32 %v126
  %vm134 = vmor %vm132, %vm133
  %v135 = vsel %vm134, %v126, %v131
  %v136 = vrsqrt.pop %v125
  %v137 = vmul.f32 %v136, %v125
  %v138 = vmul.f32 %v137, %v136
  %v139 = vmul.f32 0.5, %v138
  %v140 = vsub.f32 1.5, %v139
  %v141 = vmul.f32 %v136, %v140
  %vm142 = vweird.f32 %v125
  %vm143 = vweird.f32 %v136
  %vm144 = vmor %vm142, %vm143
  %v145 = vsel %vm144, %v136, %v141
  %v146 = vmul.f32 %v122, %v135
  %v147 = vmul.f32 %v123, %v145
  %v149 = vperm.slane %v91, 0
  %v151 = vmul.f32 %v146, %v149
  %v152 = vmul.f32 %v147, %v149
  %v154 = vperm.slane %v92, 0
  %v156 = vadd.f32 %v151, %v154
  %v157 = vadd.f32 %v152, %v154
  %v158 = vpack.c.bf16 %v157, %v156
  %v159 = vld [vmem:[%s6] sm:$0xf]
  %v160 = vld [vmem:[%s6 + $0x4] sm:$0xf]
  %v161 = vld [vmem:[%s6 + $0x8] sm:$0xf]
  %v162 = vld [vmem:[%s6 + $0xc] sm:$0xf]
  %v163 = vld [vmem:[%s7] sm:$0x1]
  %v165 = vperm.slane %v163, 0
  %v171 = vunpack.c.l.b16 %v159
  %v172 = vunpack.c.l.b16 %v160
  %v173 = vunpack.c.l.b16 %v161
  %v174 = vunpack.c.l.b16 %v162
  %v175 = vpack.c.b16 %v172, %v171
  %v176 = vpack.c.b16 %v174, %v173
  %v180 = vsel %vm69, %v158, 0
  %182 = vmatpush.bf16.msra.mxu0 0
  %183 = vmatpush.bf16.msra.mxu0 0
  %184 = vmatpush.bf16.msra.mxu0 0
  %185 = vmatpush.bf16.msra.mxu0 0
  %186 = vmatpush.bf16.msra.mxu0 0
  %187 = vmatpush.bf16.msra.mxu0 0
  %188 = vmatpush.bf16.msra.mxu0 %v176
  %189 = vmatpush.bf16.msra.mxu0 %v175
  %190 = vmatmul.bf16.gmra.mxu0 %v180
  %v191 = vpop.f32.mrf.mxu0
  %v192 = vadd.f32 %v165, %v191
  %v193 = vpop.f32.mrf.mxu0
  %v194 = vadd.f32 %v165, %v193
  %195 = vdwg.mxu0
  %v196 = vmax.f32 %v192, 0.0
  %v197 = vmax.f32 %v194, 0.0
  %v198 = vpack.c.bf16 %v197, %v196
  %v199 = vld [vmem:[%s8] sm:$0xf]
  %v200 = vld [vmem:[%s8 + $0x4] sm:$0xf]
  %v201 = vld [vmem:[%s8 + $0x8] sm:$0xf]
  %v202 = vld [vmem:[%s8 + $0xc] sm:$0xf]
  %v203 = vld [vmem:[%s8 + $0x10] sm:$0xf]
  %v204 = vld [vmem:[%s8 + $0x14] sm:$0xf]
  %v205 = vld [vmem:[%s8 + $0x18] sm:$0xf]
  %v206 = vld [vmem:[%s8 + $0x1c] sm:$0xf]
  %v207 = vld [vmem:[%s9] sm:$0x1]
  %v209 = vperm.slane %v207, 0
  %v219 = vunpack.c.l.b16 %v199
  %v220 = vunpack.c.l.b16 %v200
  %v221 = vunpack.c.l.b16 %v201
  %v222 = vunpack.c.l.b16 %v202
  %v223 = vunpack.c.l.b16 %v203
  %v224 = vunpack.c.l.b16 %v204
  %v225 = vunpack.c.l.b16 %v205
  %v226 = vunpack.c.l.b16 %v206
  %v227 = vpack.c.b16 %v220, %v219
  %v228 = vpack.c.b16 %v222, %v221
  %v229 = vpack.c.b16 %v224, %v223
  %v230 = vpack.c.b16 %v226, %v225
  %vm235 = vcmask 523264
  %v237 = vsel %vm235, %v198, 0
  %239 = vmatpush.bf16.msra.mxu0 0
  %240 = vmatpush.bf16.msra.mxu0 0
  %241 = vmatpush.bf16.msra.mxu0 0
  %242 = vmatpush.bf16.msra.mxu0 0
  %243 = vmatpush.bf16.msra.mxu0 %v230
  %244 = vmatpush.bf16.msra.mxu0 %v229
  %245 = vmatpush.bf16.msra.mxu0 %v228
  %246 = vmatpush.bf16.msra.mxu0 %v227
  %247 = vmatmul.bf16.gmra.mxu0 %v237
  %v248 = vpop.f32.mrf.mxu0
  %v249 = vadd.f32 %v209, %v248
  %v250 = vpop.f32.mrf.mxu0
  %v251 = vadd.f32 %v209, %v250
  %252 = vdwg.mxu0
  %v253 = vadd.f32 %v249, %v156
  %v254 = vadd.f32 %v251, %v157
  %v255 = vld [vmem:[%s10] sm:$0x1]
  %v256 = vld [vmem:[%s11] sm:$0x1]
  %v257 = vsel %vm69, %v253, 0.0
  %258 = vadd.xlane.f32.xlu0 %v257
  %v259 = vpop.xlane.xlu0 %258
  %v260 = vsel %vm69, %v254, 0.0
  %261 = vadd.xlane.f32.xlu0 %v260
  %v262 = vpop.xlane.xlu0 %261
  %v263 = vmul.f32 %v259, %v105
  %v264 = vmul.f32 %v262, %v105
  %v265 = vmul.f32 %v253, %v253
  %v266 = vmul.f32 %v254, %v254
  %v267 = vsel %vm69, %v265, 0.0
  %268 = vadd.xlane.f32.xlu0 %v267
  %v269 = vpop.xlane.xlu0 %268
  %v270 = vsel %vm69, %v266, 0.0
  %271 = vadd.xlane.f32.xlu0 %v270
  %v272 = vpop.xlane.xlu0 %271
  %v273 = vmul.f32 %v269, %v105
  %v274 = vmul.f32 %v272, %v105
  %v275 = vmul.f32 %v263, %v263
  %v276 = vmul.f32 %v264, %v264
  %v277 = vsub.f32 %v273, %v275
  %v278 = vsub.f32 %v274, %v276
  %v279 = vsub.f32 %v253, %v263
  %v280 = vsub.f32 %v254, %v264
  %v281 = vadd.f32 %v277, 1e-05
  %v282 = vadd.f32 %v278, 1e-05
  %v283 = vrsqrt.pop %v281
  %v284 = vmul.f32 %v283, %v281
  %v285 = vmul.f32 %v284, %v283
  %v286 = vmul.f32 0.5, %v285
  %v287 = vsub.f32 1.5, %v286
  %v288 = vmul.f32 %v283, %v287
  %vm289 = vweird.f32 %v281
  %vm290 = vweird.f32 %v283
  %vm291 = vmor %vm289, %vm290
  %v292 = vsel %vm291, %v283, %v288
  %v293 = vrsqrt.pop %v282
  %v294 = vmul.f32 %v293, %v282
  %v295 = vmul.f32 %v294, %v293
  %v296 = vmul.f32 0.5, %v295
  %v297 = vsub.f32 1.5, %v296
  %v298 = vmul.f32 %v293, %v297
  %vm299 = vweird.f32 %v282
  %vm300 = vweird.f32 %v293
  %vm301 = vmor %vm299, %vm300
  %v302 = vsel %vm301, %v293, %v298
  %v303 = vmul.f32 %v279, %v292
  %v304 = vmul.f32 %v280, %v302
  %v306 = vperm.slane %v255, 0
  %v308 = vmul.f32 %v303, %v306
  %v309 = vmul.f32 %v304, %v306
  %v311 = vperm.slane %v256, 0
  %v313 = vadd.f32 %v308, %v311
  %v314 = vadd.f32 %v309, %v311
  %315 = vst.msk [vmem:[%s12] sm:$0xff] %vm69, %v313
  %316 = vst.msk [vmem:[%s12 + $0x8] sm:$0xff] %vm69, %v314
  // Predicated region
  $region50: #{encoder_forward.8} parent=0 // pred_check
    _
  $region51: #{encoder_forward.8} parent=0 // pred_check_branch
    %318 = sbr.rel (0) target = $region53
  $region52: #{encoder_forward.8} parent=0 // pred_region
    _
  $region53: #{encoder_forward.8} parent=0 // pred_fallthru
    _
  // Predicated region
  $region54: #{encoder_forward.8} parent=0 // pred_check
    _
  $region55: #{encoder_forward.8} parent=0 // pred_check_branch
    %320 = sbr.rel (0) target = $region57
  $region56: #{encoder_forward.8} parent=0 // pred_region
    _
  $region57: #{encoder_forward.8} parent=0 // pred_fallthru
    _

// kernel: encoder_forward.11
$region0: #{encoder_forward.11}
  #allocation0 [shape = 'u32[]', space=smem, size = 0x4, offset = 0x4, fixed_abs, tag = 'smem constant byte address 0x4 - core index']
  #allocation1 [shape = 'u32[72,128]{1,0:T(1,128)}', space=vmem, size = 0x9000, scoped, tag = 'internal scratch']
  %s0 = inlined_call_operand.vmem [shape: bf16[16,32], index: 0, kind: input, shape index: {}]
  %s1 = inlined_call_operand.vmem [shape: f32[16,32], index: 1, kind: input, shape index: {}]
  %s2 = inlined_call_operand.vmem [shape: bf16[32,32], index: 2, kind: input, shape index: {}]
  %s3 = inlined_call_operand.vmem [shape: f32[1,32], index: 3, kind: input, shape index: {}]
  %s4 = inlined_call_operand.vmem [shape: f32[1,32], index: 4, kind: input, shape index: {}]
  %s5 = inlined_call_operand.vmem [shape: f32[1,32], index: 5, kind: input, shape index: {}]
  %s6 = inlined_call_operand.vmem [shape: bf16[32,64], index: 6, kind: input, shape index: {}]
  %s7 = inlined_call_operand.vmem [shape: f32[1,64], index: 7, kind: input, shape index: {}]
  %s8 = inlined_call_operand.vmem [shape: bf16[64,32], index: 8, kind: input, shape index: {}]
  %s9 = inlined_call_operand.vmem [shape: f32[1,32], index: 9, kind: input, shape index: {}]
  %s10 = inlined_call_operand.vmem [shape: f32[1,32], index: 10, kind: input, shape index: {}]
  %s11 = inlined_call_operand.vmem [shape: f32[1,32], index: 11, kind: input, shape index: {}]
  %s12 = inlined_call_operand.hbm [shape: f32[16,32], index: 12, kind: output, shape index: {}]
  %s13 = sld [smem:[#allocation0]]
  $region58: #{encoder_forward.11} parent=0
    _
  %s15 = ssub.s32 1, %s13
  %s16 = scalar_select 0, %s15, %s13
  $region1: #{encoder_forward.11} parent=0
    #allocation2 [shape = 'u8[8192]{0}', space=vmem, size = 0x2000, scoped, tag = 'output window, operand 0, single buffered']
    #allocation3 [shape = 's32[1]{0}', space=sflag, size = 0x4, scoped, tag = 'scoped memory for encoder_forward.11']
    %17 = vsyncpa [#allocation3], 0
    // Predicated region
    $region2: #{encoder_forward.11} parent=1 // pred_check
      _
    $region3: #{encoder_forward.11} parent=1 // pred_check_branch
      %19 = sbr.rel (0) target = $region5
    $region4: #{encoder_forward.11} parent=1 // pred_region
      _
    $region5: #{encoder_forward.11} parent=1 // pred_fallthru
      _
    // Predicated region
    $region6: #{encoder_forward.11} parent=1 // pred_check
      _
    $region7: #{encoder_forward.11} parent=1 // pred_check_branch
      %21 = sbr.rel (0) target = $region9
    $region8: #{encoder_forward.11} parent=1 // pred_region
      _
    $region9: #{encoder_forward.11} parent=1 // pred_fallthru
      _
    // Predicated region
    $region10: #{encoder_forward.11} parent=1 // pred_check
      _
    $region11: #{encoder_forward.11} parent=1 // pred_check_branch
      %23 = sbr.rel (0) target = $region13
    $region12: #{encoder_forward.11} parent=1 // pred_region
      _
    $region13: #{encoder_forward.11} parent=1 // pred_fallthru
      _
    // Predicated region
    $region14: #{encoder_forward.11} parent=1 // pred_check
      _
    $region15: #{encoder_forward.11} parent=1 // pred_check_branch
      %25 = sbr.rel (0) target = $region17
    $region16: #{encoder_forward.11} parent=1 // pred_region
      _
    $region17: #{encoder_forward.11} parent=1 // pred_fallthru
      _
    // Predicated region
    $region18: #{encoder_forward.11} parent=1 // pred_check
      _
    $region19: #{encoder_forward.11} parent=1 // pred_check_branch
      %27 = sbr.rel (0) target = $region21
    $region20: #{encoder_forward.11} parent=1 // pred_region
      _
    $region21: #{encoder_forward.11} parent=1 // pred_fallthru
      _
    // Predicated region
    $region22: #{encoder_forward.11} parent=1 // pred_check
      _
    $region23: #{encoder_forward.11} parent=1 // pred_check_branch
      %29 = sbr.rel (0) target = $region25
    $region24: #{encoder_forward.11} parent=1 // pred_region
      _
    $region25: #{encoder_forward.11} parent=1 // pred_fallthru
      _
    // Predicated region
    $region26: #{encoder_forward.11} parent=1 // pred_check
      _
    $region27: #{encoder_forward.11} parent=1 // pred_check_branch
      %31 = sbr.rel (0) target = $region29
    $region28: #{encoder_forward.11} parent=1 // pred_region
      _
    $region29: #{encoder_forward.11} parent=1 // pred_fallthru
      _
    // Predicated region
    $region30: #{encoder_forward.11} parent=1 // pred_check
      _
    $region31: #{encoder_forward.11} parent=1 // pred_check_branch
      %33 = sbr.rel (0) target = $region33
    $region32: #{encoder_forward.11} parent=1 // pred_region
      _
    $region33: #{encoder_forward.11} parent=1 // pred_fallthru
      _
    // Predicated region
    $region34: #{encoder_forward.11} parent=1 // pred_check
      _
    $region35: #{encoder_forward.11} parent=1 // pred_check_branch
      %35 = sbr.rel (0) target = $region37
    $region36: #{encoder_forward.11} parent=1 // pred_region
      _
    $region37: #{encoder_forward.11} parent=1 // pred_fallthru
      _
    // Predicated region
    $region38: #{encoder_forward.11} parent=1 // pred_check
      _
    $region39: #{encoder_forward.11} parent=1 // pred_check_branch
      %37 = sbr.rel (0) target = $region41
    $region40: #{encoder_forward.11} parent=1 // pred_region
      _
    $region41: #{encoder_forward.11} parent=1 // pred_fallthru
      _
    // Predicated region
    $region42: #{encoder_forward.11} parent=1 // pred_check
      _
    $region43: #{encoder_forward.11} parent=1 // pred_check_branch
      %39 = sbr.rel (0) target = $region45
    $region44: #{encoder_forward.11} parent=1 // pred_region
      _
    $region45: #{encoder_forward.11} parent=1 // pred_fallthru
      _
    // Predicated region
    $region46: #{encoder_forward.11} parent=1 // pred_check
      _
    $region47: #{encoder_forward.11} parent=1 // pred_check_branch
      %41 = sbr.rel (0) target = $region49
    $region48: #{encoder_forward.11} parent=1 // pred_region
      _
    $region49: #{encoder_forward.11} parent=1 // pred_fallthru
      _
    %v43 = vld [vmem:[%s0] sm:$0xf]
    %v44 = vld [vmem:[%s0 + $0x4] sm:$0xf]
    %v45 = vld [vmem:[%s2] sm:$0xf]
    %v46 = vld [vmem:[%s2 + $0x4] sm:$0xf]
    %v47 = vld [vmem:[%s2 + $0x8] sm:$0xf]
    %v48 = vld [vmem:[%s2 + $0xc] sm:$0xf]
    %v49 = vld [vmem:[%s3] sm:$0x1]
    %v51 = vperm.slane %v49, 0
    %v55 = vunpack.c.l.b16 %v43
    %v56 = vunpack.c.l.b16 %v44
    %v57 = vpack.c.b16 %v56, %v55
    %v62 = vunpack.c.l.b16 %v45
    %v63 = vunpack.c.l.b16 %v46
    %v64 = vunpack.c.l.b16 %v47
    %v65 = vunpack.c.l.b16 %v48
    %v66 = vpack.c.b16 %v63, %v62
    %v67 = vpack.c.b16 %v65, %v64
    %vm70 = vcmask 261120
    %v72 = vsel %vm70, %v57, 0
    %74 = vmatpush.bf16.msra.mxu0 0
    %75 = vmatpush.bf16.msra.mxu0 0
    %76 = vmatpush.bf16.msra.mxu0 0
    %77 = vmatpush.bf16.msra.mxu0 0
    %78 = vmatpush.bf16.msra.mxu0 0
    %79 = vmatpush.bf16.msra.mxu0 0
    %80 = vmatpush.bf16.msra.mxu0 %v67
    %81 = vmatpush.bf16.msra.mxu0 %v66
    %82 = vmatmul.bf16.gmra.mxu0 %v72
    %v83 = vpop.f32.mrf.mxu0
    %v84 = vadd.f32 %v51, %v83
    %v85 = vpop.f32.mrf.mxu0
    %v86 = vadd.f32 %v51, %v85
    %87 = vdwg.mxu0
    %v88 = vld [vmem:[%s1] sm:$0xff]
    %v89 = vld [vmem:[%s1 + $0x8] sm:$0xff]
    %v90 = vadd.f32 %v84, %v88
    %v91 = vadd.f32 %v86, %v89
    %v92 = vld [vmem:[%s4] sm:$0x1]
    %v93 = vld [vmem:[%s5] sm:$0x1]
    %v94 = vsel %vm70, %v90, 0.0
    %95 = vadd.xlane.f32.xlu0 %v94
    %v96 = vpop.xlane.xlu0 %95
    %v97 = vsel %vm70, %v91, 0.0
    %98 = vadd.xlane.f32.xlu0 %v97
    %v99 = vpop.xlane.xlu0 %98
    %v100 = vrcp.pop 32.0
    %v101 = vmul.f32 32.0, %v100
    %v102 = vsub.f32 1.0, %v101
    %v103 = vmul.f32 %v100, %v102
    %v104 = vadd.f32 %v100, %v103
    %vm105 = vweird.f32 %v100
    %v106 = vsel %vm105, %v100, %v104
    %v107 = vmul.f32 %v96, %v106
    %v108 = vmul.f32 %v99, %v106
    %v109 = vmul.f32 %v90, %v90
    %v110 = vmul.f32 %v91, %v91
    %v111 = vsel %vm70, %v109, 0.0
    %112 = vadd.xlane.f32.xlu0 %v111
    %v113 = vpop.xlane.xlu0 %112
    %v114 = vsel %vm70, %v110, 0.0
    %115 = vadd.xlane.f32.xlu0 %v114
    %v116 = vpop.xlane.xlu0 %115
    %v117 = vmul.f32 %v113, %v106
    %v118 = vmul.f32 %v116, %v106
    %v119 = vmul.f32 %v107, %v107
    %v120 = vmul.f32 %v108, %v108
    %v121 = vsub.f32 %v117, %v119
    %v122 = vsub.f32 %v118, %v120
    %v123 = vsub.f32 %v90, %v107
    %v124 = vsub.f32 %v91, %v108
    %v125 = vadd.f32 %v121, 1e-05
    %v126 = vadd.f32 %v122, 1e-05
    %v127 = vrsqrt.pop %v125
    %v128 = vmul.f32 %v127, %v125
    %v129 = vmul.f32 %v128, %v127
    %v130 = vmul.f32 0.5, %v129
    %v131 = vsub.f32 1.5, %v130
    %v132 = vmul.f32 %v127, %v131
    %vm133 = vweird.f32 %v125
    %vm134 = vweird.f32 %v127
    %vm135 = vmor %vm133, %vm134
    %v136 = vsel %vm135, %v127, %v132
    %v137 = vrsqrt.pop %v126
    %v138 = vmul.f32 %v137, %v126
    %v139 = vmul.f32 %v138, %v137
    %v140 = vmul.f32 0.5, %v139
    %v141 = vsub.f32 1.5, %v140
    %v142 = vmul.f32 %v137, %v141
    %vm143 = vweird.f32 %v126
    %vm144 = vweird.f32 %v137
    %vm145 = vmor %vm143, %vm144
    %v146 = vsel %vm145, %v137, %v142
    %v147 = vmul.f32 %v123, %v136
    %v148 = vmul.f32 %v124, %v146
    %v150 = vperm.slane %v92, 0
    %v152 = vmul.f32 %v147, %v150
    %v153 = vmul.f32 %v148, %v150
    %v155 = vperm.slane %v93, 0
    %v157 = vadd.f32 %v152, %v155
    %v158 = vadd.f32 %v153, %v155
    %v159 = vpack.c.bf16 %v158, %v157
    %v160 = vld [vmem:[%s6] sm:$0xf]
    %v161 = vld [vmem:[%s6 + $0x4] sm:$0xf]
    %v162 = vld [vmem:[%s6 + $0x8] sm:$0xf]
    %v163 = vld [vmem:[%s6 + $0xc] sm:$0xf]
    %v164 = vld [vmem:[%s7] sm:$0x1]
    %v166 = vperm.slane %v164, 0
    %v172 = vunpack.c.l.b16 %v160
    %v173 = vunpack.c.l.b16 %v161
    %v174 = vunpack.c.l.b16 %v162
    %v175 = vunpack.c.l.b16 %v163
    %v176 = vpack.c.b16 %v173, %v172
    %v177 = vpack.c.b16 %v175, %v174
    %v181 = vsel %vm70, %v159, 0
    %183 = vmatpush.bf16.msra.mxu0 0
    %184 = vmatpush.bf16.msra.mxu0 0
    %185 = vmatpush.bf16.msra.mxu0 0
    %186 = vmatpush.bf16.msra.mxu0 0
    %187 = vmatpush.bf16.msra.mxu0 0
    %188 = vmatpush.bf16.msra.mxu0 0
    %189 = vmatpush.bf16.msra.mxu0 %v177
    %190 = vmatpush.bf16.msra.mxu0 %v176
    %191 = vmatmul.bf16.gmra.mxu0 %v181
    %v192 = vpop.f32.mrf.mxu0
    %v193 = vadd.f32 %v166, %v192
    %v194 = vpop.f32.mrf.mxu0
    %v195 = vadd.f32 %v166, %v194
    %196 = vdwg.mxu0
    %v197 = vmax.f32 %v193, 0.0
    %v198 = vmax.f32 %v195, 0.0
    %v199 = vpack.c.bf16 %v198, %v197
    %v200 = vld [vmem:[%s8] sm:$0xf]
    %v201 = vld [vmem:[%s8 + $0x4] sm:$0xf]
    %v202 = vld [vmem:[%s8 + $0x8] sm:$0xf]
    %v203 = vld [vmem:[%s8 + $0xc] sm:$0xf]
    %v204 = vld [vmem:[%s8 + $0x10] sm:$0xf]
    %v205 = vld [vmem:[%s8 + $0x14] sm:$0xf]
    %v206 = vld [vmem:[%s8 + $0x18] sm:$0xf]
    %v207 = vld [vmem:[%s8 + $0x1c] sm:$0xf]
    %v208 = vld [vmem:[%s9] sm:$0x1]
    %v210 = vperm.slane %v208, 0
    %v220 = vunpack.c.l.b16 %v200
    %v221 = vunpack.c.l.b16 %v201
    %v222 = vunpack.c.l.b16 %v202
    %v223 = vunpack.c.l.b16 %v203
    %v224 = vunpack.c.l.b16 %v204
    %v225 = vunpack.c.l.b16 %v205
    %v226 = vunpack.c.l.b16 %v206
    %v227 = vunpack.c.l.b16 %v207
    %v228 = vpack.c.b16 %v221, %v220
    %v229 = vpack.c.b16 %v223, %v222
    %v230 = vpack.c.b16 %v225, %v224
    %v231 = vpack.c.b16 %v227, %v226
    %vm236 = vcmask 523264
    %v238 = vsel %vm236, %v199, 0
    %240 = vmatpush.bf16.msra.mxu0 0
    %241 = vmatpush.bf16.msra.mxu0 0
    %242 = vmatpush.bf16.msra.mxu0 0
    %243 = vmatpush.bf16.msra.mxu0 0
    %244 = vmatpush.bf16.msra.mxu0 %v231
    %245 = vmatpush.bf16.msra.mxu0 %v230
    %246 = vmatpush.bf16.msra.mxu0 %v229
    %247 = vmatpush.bf16.msra.mxu0 %v228
    %248 = vmatmul.bf16.gmra.mxu0 %v238
    %v249 = vpop.f32.mrf.mxu0
    %v250 = vadd.f32 %v210, %v249
    %v251 = vpop.f32.mrf.mxu0
    %v252 = vadd.f32 %v210, %v251
    %253 = vdwg.mxu0
    %v254 = vadd.f32 %v250, %v157
    %v255 = vadd.f32 %v252, %v158
    %v256 = vld [vmem:[%s10] sm:$0x1]
    %v257 = vld [vmem:[%s11] sm:$0x1]
    %v258 = vsel %vm70, %v254, 0.0
    %259 = vadd.xlane.f32.xlu0 %v258
    %v260 = vpop.xlane.xlu0 %259
    %v261 = vsel %vm70, %v255, 0.0
    %262 = vadd.xlane.f32.xlu0 %v261
    %v263 = vpop.xlane.xlu0 %262
    %v264 = vmul.f32 %v260, %v106
    %v265 = vmul.f32 %v263, %v106
    %v266 = vmul.f32 %v254, %v254
    %v267 = vmul.f32 %v255, %v255
    %v268 = vsel %vm70, %v266, 0.0
    %269 = vadd.xlane.f32.xlu0 %v268
    %v270 = vpop.xlane.xlu0 %269
    %v271 = vsel %vm70, %v267, 0.0
    %272 = vadd.xlane.f32.xlu0 %v271
    %v273 = vpop.xlane.xlu0 %272
    %v274 = vmul.f32 %v270, %v106
    %v275 = vmul.f32 %v273, %v106
    %v276 = vmul.f32 %v264, %v264
    %v277 = vmul.f32 %v265, %v265
    %v278 = vsub.f32 %v274, %v276
    %v279 = vsub.f32 %v275, %v277
    %v280 = vsub.f32 %v254, %v264
    %v281 = vsub.f32 %v255, %v265
    %v282 = vadd.f32 %v278, 1e-05
    %v283 = vadd.f32 %v279, 1e-05
    %v284 = vrsqrt.pop %v282
    %v285 = vmul.f32 %v284, %v282
    %v286 = vmul.f32 %v285, %v284
    %v287 = vmul.f32 0.5, %v286
    %v288 = vsub.f32 1.5, %v287
    %v289 = vmul.f32 %v284, %v288
    %vm290 = vweird.f32 %v282
    %vm291 = vweird.f32 %v284
    %vm292 = vmor %vm290, %vm291
    %v293 = vsel %vm292, %v284, %v289
    %v294 = vrsqrt.pop %v283
    %v295 = vmul.f32 %v294, %v283
    %v296 = vmul.f32 %v295, %v294
    %v297 = vmul.f32 0.5, %v296
    %v298 = vsub.f32 1.5, %v297
    %v299 = vmul.f32 %v294, %v298
    %vm300 = vweird.f32 %v283
    %vm301 = vweird.f32 %v294
    %vm302 = vmor %vm300, %vm301
    %v303 = vsel %vm302, %v294, %v299
    %v304 = vmul.f32 %v280, %v293
    %v305 = vmul.f32 %v281, %v303
    %v307 = vperm.slane %v256, 0
    %v309 = vmul.f32 %v304, %v307
    %v310 = vmul.f32 %v305, %v307
    %v312 = vperm.slane %v257, 0
    %v314 = vadd.f32 %v309, %v312
    %v315 = vadd.f32 %v310, %v312
    %316 = vst.msk [vmem:[#allocation2] sm:$0xff] %vm70, %v314
    %317 = vst.msk [vmem:[#allocation2 + $0x8] sm:$0xff] %vm70, %v315
    // Predicated region
    $region50: #{encoder_forward.11} parent=1 // pred_check
      _
    $region51: #{encoder_forward.11} parent=1 // pred_check_branch
      %319 = sbr.rel (0) target = $region53
    $region52: #{encoder_forward.11} parent=1 // pred_region
      %321 = vsyncadd [#allocation3], 0
      %s322 = sshll.u32 [#allocation2], 4
      %s323 = int_to_ptr.vmem [resolvable:$true] %s322
      %s324 = sshll.u32 %s12, 4
      %s325 = int_to_ptr.hbm [resolvable:$true] %s324
      %330 = dma.vmem_to_hbm [thread:$0]  %s323, 256, %s325, [#allocation3], 128, 128, 8
    $region53: #{encoder_forward.11} parent=1 // pred_fallthru
      _
    // Predicated region
    $region54: #{encoder_forward.11} parent=1 // pred_check
      _
    $region55: #{encoder_forward.11} parent=1 // pred_check_branch
      %332 = sbr.rel (0) target = $region57
    $region56: #{encoder_forward.11} parent=1 // pred_region
      %334 = dma.done [#allocation3], 256
    $region57: #{encoder_forward.11} parent=1 // pred_fallthru
      _
    %335 = vsyncpa [#allocation3], 1

</llo_original>
